<compile_context>
chip_gen: v7x
topology: tpu7x:2x2x1
jax: 0.10.0
libtpu: 0.0.40
codegen_flags: <defaults>
</compile_context>

<pallas_src>
import functools

import jax
import jax.numpy as jnp
from jax import lax
from jax.experimental import pallas as pl
from jax.experimental.pallas import tpu as pltpu


# --------------------------------------------------------------------------
# Fused LSTM kernel: one grid step == one chunk of T timesteps.
# --------------------------------------------------------------------------
def lstm_chunk_kernel(xproj_ref, h0_ref, c0_ref, whh_ref,
                      out_ref, hN_ref, cN_ref, h_sc, c_sc):
    """Process T timesteps of the recurrence.

    xproj_ref : (T, B, 4H)  precomputed x @ W_ih^T + (b_ih + b_hh), gate order (i,f,o,g)
    h0/c0     : (B, H)      initial states (constant-index, resident)
    whh_ref   : (H, 4H)     recurrent weight W_hh^T (constant-index, resident)
    out_ref   : (T, B, H)   per-chunk hidden outputs
    hN/cN     : (B, H)      final states (constant-index, written on last chunk only)
    h_sc/c_sc : (B, H)      state carried across grid steps in VMEM scratch
    """
    chunk = pl.program_id(0)
    T = out_ref.shape[0]
    H = h_sc.shape[-1]

    @pl.when(chunk == 0)
    def _():
        h_sc[...] = h0_ref[...]
        c_sc[...] = c0_ref[...]

    whh = whh_ref[...]  # resident recurrent weight, loaded once per chunk

    def step(t, carry):
        h, c = carry
        # Only the recurrent matmul sits on the serial critical path.
        gates = xproj_ref[t] + jnp.dot(h, whh, preferred_element_type=jnp.float32)
        # Gate order (i, f, o, g): one contiguous sigmoid over 0:3H, tanh on 3H:4H.
        sig = jax.nn.sigmoid(gates[:, :3 * H])
        i_g = sig[:, 0 * H:1 * H]
        f_g = sig[:, 1 * H:2 * H]
        o_g = sig[:, 2 * H:3 * H]
        g_g = jnp.tanh(gates[:, 3 * H:4 * H])
        c_new = f_g * c + i_g * g_g
        h_new = o_g * jnp.tanh(c_new)
        out_ref[t] = h_new
        return h_new, c_new

    h, c = lax.fori_loop(0, T, step, (h_sc[...], c_sc[...]), unroll=True)

    # Carry state to the next chunk (one (B,H) store per chunk, not per step).
    h_sc[...] = h
    c_sc[...] = c

    @pl.when(chunk == pl.num_programs(0) - 1)
    def _():
        hN_ref[...] = h
        cN_ref[...] = c


def lstm_layer(x_proj, h0, c0, w_hh_t, *, time_chunk):
    """Single LSTM layer over the whole sequence in ONE pallas_call."""
    S, B, G = x_proj.shape
    H = w_hh_t.shape[0]
    assert G == 4 * H
    assert S % time_chunk == 0, "sequence length must be divisible by time_chunk"
    n_chunks = S // time_chunk

    grid_spec = pltpu.PrefetchScalarGridSpec(
        num_scalar_prefetch=0,
        grid=(n_chunks,),
        in_specs=[
            pl.BlockSpec((time_chunk, B, 4 * H), lambda s: (s, 0, 0)),  # x-projection chunk
            pl.BlockSpec((B, H), lambda s: (0, 0)),                     # h0 (resident)
            pl.BlockSpec((B, H), lambda s: (0, 0)),                     # c0 (resident)
            pl.BlockSpec((H, 4 * H), lambda s: (0, 0)),                 # W_hh^T (resident)
        ],
        out_specs=(
            pl.BlockSpec((time_chunk, B, H), lambda s: (s, 0, 0)),      # per-chunk hiddens
            pl.BlockSpec((B, H), lambda s: (0, 0)),                     # final hidden
            pl.BlockSpec((B, H), lambda s: (0, 0)),                     # final cell
        ),
        scratch_shapes=[
            pltpu.VMEM((B, H), jnp.float32),                            # carried h
            pltpu.VMEM((B, H), jnp.float32),                            # carried c
        ],
    )

    # Rough VMEM budget: double-buffered chunk I/O + resident weight + states.
    est = 4 * (2 * time_chunk * B * 5 * H        # xproj + out chunks (x2 buffers)
               + 2 * H * 4 * H                   # W_hh^T (x2 buffers)
               + 8 * B * H)                      # h0/c0/hN/cN/scratch
    vmem_limit = min(100 << 20, max(16 << 20, 2 * est))

    # TODO(synk): at realistic H/B/S, cast the resident W_hh^T (and wrapper-side
    # W_ih^T) to bf16 for the MXU (keep gate math f32), mark the constant-index
    # resident specs pipeline_mode=pl.Buffered(1), and on v7x split B across the
    # two TensorCores with a leading "parallel" grid axis.
    return pl.pallas_call(
        lstm_chunk_kernel,
        out_shape=(
            jax.ShapeDtypeStruct((S, B, H), jnp.float32),
            jax.ShapeDtypeStruct((B, H), jnp.float32),
            jax.ShapeDtypeStruct((B, H), jnp.float32),
        ),
        grid_spec=grid_spec,
        compiler_params=pltpu.CompilerParams(
            dimension_semantics=("arbitrary",),   # true recurrence over time
            vmem_limit_bytes=vmem_limit,
        ),
    )(x_proj, h0, c0, w_hh_t)


# --------------------------------------------------------------------------
# Encoder forward: hoisted input projections in XLA, recurrence in Pallas.
# --------------------------------------------------------------------------
@functools.partial(jax.jit, static_argnames=("time_chunk",))
def encoder_forward(params, x, hidden_state, cell_state, *, time_chunk):
    """x: (S, B) int32; hidden_state/cell_state: (num_layers, B, H).
    Returns (out (S,B,H), hidden (L,B,H), cell (L,B,H)) like Encoder.forward."""
    num_layers = len(params["w_hh_t"])
    # Layer 0: embedding is folded into the projection table; one gather gives
    # the full-sequence input projection directly (pad_index rows stay zero).
    x_proj = params["proj_table"][x] + params["b"][0]                  # (S, B, 4H)
    seq = None
    h_out, c_out = [], []
    for layer in range(num_layers):
        if layer > 0:
            # One large, well-shaped batched matmul outside the recurrence.
            x_proj = jnp.einsum("sbh,hg->sbg", seq, params["w_ih_t"][layer]) + params["b"][layer]
        seq, hN, cN = lstm_layer(x_proj, hidden_state[layer], cell_state[layer],
                                 params["w_hh_t"][layer], time_chunk=time_chunk)
        h_out.append(hN)
        c_out.append(cN)
    return seq, jnp.stack(h_out, axis=0), jnp.stack(c_out, axis=0)


# --------------------------------------------------------------------------
# Parameters: synthetic weights in PyTorch layout, then fused/permuted for the kernel.
# --------------------------------------------------------------------------
def init_encoder_params_torch_layout(key, vocab_sz, embd_sz, hidden_sz, pad_index, num_layers):
    """PyTorch-layout params: W_ih (4H,in), W_hh (4H,H), b_ih/b_hh (4H,), gate order (i,f,g,o)."""
    def u(k, shape, scale=0.1):
        return jax.random.uniform(k, shape, jnp.float32, -scale, scale)

    keys = jax.random.split(key, 1 + 4 * num_layers)
    embedding = u(keys[0], (vocab_sz, embd_sz)).at[pad_index].set(0.0)  # padding_idx row = 0
    w_ih, w_hh, b_ih, b_hh = [], [], [], []
    in_sz = embd_sz
    for layer in range(num_layers):
        k1, k2, k3, k4 = keys[1 + 4 * layer:1 + 4 * (layer + 1)]
        w_ih.append(u(k1, (4 * hidden_sz, in_sz)))
        w_hh.append(u(k2, (4 * hidden_sz, hidden_sz)))
        b_ih.append(u(k3, (4 * hidden_sz,)))
        b_hh.append(u(k4, (4 * hidden_sz,)))
        in_sz = hidden_sz
    return dict(embedding=embedding, w_ih=w_ih, w_hh=w_hh, b_ih=b_ih, b_hh=b_hh)


def prepare_kernel_params(raw, hidden_sz):
    """Permute PyTorch gate order (i,f,g,o) -> (i,f,o,g), transpose weights,
    fuse biases, and fold the embedding into layer 0's projection table."""
    H = hidden_sz
    perm = jnp.concatenate([jnp.arange(0, 2 * H),          # i, f
                            jnp.arange(3 * H, 4 * H),       # o
                            jnp.arange(2 * H, 3 * H)])      # g
    w_ih_t, w_hh_t, bias = [], [], []
    for wih, whh, bih, bhh in zip(raw["w_ih"], raw["w_hh"], raw["b_ih"], raw["b_hh"]):
        w_ih_t.append(jnp.transpose(wih[perm]))             # (in, 4H), (i,f,o,g) columns
        w_hh_t.append(jnp.transpose(whh[perm]))             # (H, 4H)
        bias.append((bih + bhh)[perm][None, :])             # (1, 4H)
    proj_table = raw["embedding"] @ w_ih_t[0]                # (vocab, 4H)
    return dict(proj_table=proj_table, w_ih_t=w_ih_t, w_hh_t=w_hh_t, b=bias)


# --------------------------------------------------------------------------
# Pure-JAX reference in the original PyTorch layout (for correctness check).
# --------------------------------------------------------------------------
def reference_forward(raw, x, hidden_state, cell_state):
    seq = raw["embedding"][x]
    H = hidden_state.shape[-1]
    h_out, c_out = [], []
    for layer, (wih, whh, bih, bhh) in enumerate(zip(raw["w_ih"], raw["w_hh"],
                                                     raw["b_ih"], raw["b_hh"])):
        b = bih + bhh

        def step(carry, x_t, wih=wih, whh=whh, b=b):
            h, c = carry
            gates = x_t @ wih.T + h @ whh.T + b
            i = jax.nn.sigmoid(gates[:, 0 * H:1 * H])
            f = jax.nn.sigmoid(gates[:, 1 * H:2 * H])
            g = jnp.tanh(gates[:, 2 * H:3 * H])
            o = jax.nn.sigmoid(gates[:, 3 * H:4 * H])
            c = f * c + i * g
            h = o * jnp.tanh(c)
            return (h, c), h

        (hN, cN), seq = lax.scan(step, (hidden_state[layer], cell_state[layer]), seq)
        h_out.append(hN)
        c_out.append(cN)
    return seq, jnp.stack(h_out, axis=0), jnp.stack(c_out, axis=0)


if __name__ == "__main__":
    VOCAB, EMBD, HIDDEN, PAD, LAYERS = 16, 32, 32, 0, 2
    SEQ, BATCH = 8, 2
    TIME_CHUNK = 4                       # grid = (SEQ // TIME_CHUNK,) = (2,)

    key = jax.random.PRNGKey(0)
    kp, kx = jax.random.split(key)
    raw_params = init_encoder_params_torch_layout(kp, VOCAB, EMBD, HIDDEN, PAD, LAYERS)
    kernel_params = prepare_kernel_params(raw_params, HIDDEN)

    x = jax.random.randint(kx, (SEQ, BATCH), 0, VOCAB, jnp.int32)
    # Encoder.init_hidden: zero initial states (num_layers, batch, hidden)
    h0 = jnp.zeros((LAYERS, BATCH, HIDDEN), jnp.float32)
    c0 = jnp.zeros((LAYERS, BATCH, HIDDEN), jnp.float32)

    out, hN, cN = encoder_forward(kernel_params, x, h0, c0, time_chunk=TIME_CHUNK)
    out = jax.block_until_ready(out)

    assert out.shape == (SEQ, BATCH, HIDDEN)
    assert hN.shape == (LAYERS, BATCH, HIDDEN)
    assert cN.shape == (LAYERS, BATCH, HIDDEN)
    assert bool(jnp.all(jnp.isfinite(out)))

    ref_out, ref_h, ref_c = reference_forward(raw_params, x, h0, c0)
    assert jnp.allclose(out, ref_out, atol=1e-3, rtol=1e-3)
    assert jnp.allclose(hN, ref_h, atol=1e-3, rtol=1e-3)
    assert jnp.allclose(cN, ref_c, atol=1e-3, rtol=1e-3)

    print("KERNEL_OK")
</pallas_src>

<mosaic_0001>
module attributes {stable_mosaic.version = 11 : i64} {
  func.func @lstm_chunk_kernel(%arg0: i32, %arg1: memref<4x2x128xf32, #tpu.memory_space<vmem>>, %arg2: memref<2x32xf32, #tpu.memory_space<vmem>>, %arg3: memref<2x32xf32, #tpu.memory_space<vmem>>, %arg4: memref<32x128xf32, #tpu.memory_space<vmem>>, %arg5: memref<4x2x32xf32, #tpu.memory_space<vmem>>, %arg6: memref<2x32xf32, #tpu.memory_space<vmem>>, %arg7: memref<2x32xf32, #tpu.memory_space<vmem>>, %arg8: memref<2x32xf32, #tpu.memory_space<vmem>>, %arg9: memref<2x32xf32, #tpu.memory_space<vmem>>) attributes {dimension_semantics = [#tpu.dimension_semantics<arbitrary>], iteration_bounds = array<i64: 2>, scalar_prefetch = 0 : i64, scratch_operands = 2 : i64, tpu.core_type = #tpu.core_type<tc>, window_params = [{transform_indices = @transform_0, window_bounds = array<i64: 4, 2, 128>}, {pipeline_mode = #tpu.pipeline_mode<synchronous>, transform_indices = @transform_1, window_bounds = array<i64: 2, 32>}, {pipeline_mode = #tpu.pipeline_mode<synchronous>, transform_indices = @transform_2, window_bounds = array<i64: 2, 32>}, {pipeline_mode = #tpu.pipeline_mode<synchronous>, transform_indices = @transform_3, window_bounds = array<i64: 32, 128>}, {transform_indices = @transform_4, window_bounds = array<i64: 4, 2, 32>}, {pipeline_mode = #tpu.pipeline_mode<synchronous>, transform_indices = @transform_5, window_bounds = array<i64: 2, 32>}, {pipeline_mode = #tpu.pipeline_mode<synchronous>, transform_indices = @transform_6, window_bounds = array<i64: 2, 32>}]} {
    %c0_i32 = arith.constant 0 : i32
    %0 = arith.cmpi eq, %arg0, %c0_i32 : i32
    %1 = arith.extui %0 : i1 to i32
    %c0_i32_0 = arith.constant 0 : i32
    %2 = arith.cmpi ne, %1, %c0_i32_0 : i32
    scf.if %2 {
      %c0_36 = arith.constant 0 : index
      %c0_37 = arith.constant 0 : index
      %111 = vector.load %arg2[%c0_36, %c0_37] : memref<2x32xf32, #tpu.memory_space<vmem>>, vector<2x32xf32>
      %c0_38 = arith.constant 0 : index
      %c0_39 = arith.constant 0 : index
      %112 = vector.load %arg8[%c0_38, %c0_39] : memref<2x32xf32, #tpu.memory_space<vmem>>, vector<2x32xf32>
      tpu.vector_store %arg8[%c0_38, %c0_39], %111 {strides = array<i32>} : memref<2x32xf32, #tpu.memory_space<vmem>>, vector<2x32xf32>,
      %c0_40 = arith.constant 0 : index
      %c0_41 = arith.constant 0 : index
      %113 = vector.load %arg3[%c0_40, %c0_41] : memref<2x32xf32, #tpu.memory_space<vmem>>, vector<2x32xf32>
      %c0_42 = arith.constant 0 : index
      %c0_43 = arith.constant 0 : index
      %114 = vector.load %arg9[%c0_42, %c0_43] : memref<2x32xf32, #tpu.memory_space<vmem>>, vector<2x32xf32>
      tpu.vector_store %arg9[%c0_42, %c0_43], %113 {strides = array<i32>} : memref<2x32xf32, #tpu.memory_space<vmem>>, vector<2x32xf32>,
    } else {
    }
    %c0 = arith.constant 0 : index
    %c0_1 = arith.constant 0 : index
    %3 = vector.load %arg4[%c0, %c0_1] : memref<32x128xf32, #tpu.memory_space<vmem>>, vector<32x128xf32>
    %c0_2 = arith.constant 0 : index
    %c0_3 = arith.constant 0 : index
    %4 = vector.load %arg8[%c0_2, %c0_3] : memref<2x32xf32, #tpu.memory_space<vmem>>, vector<2x32xf32>
    %c0_4 = arith.constant 0 : index
    %c0_5 = arith.constant 0 : index
    %5 = vector.load %arg9[%c0_4, %c0_5] : memref<2x32xf32, #tpu.memory_space<vmem>>, vector<2x32xf32>
    %c0_i32_6 = arith.constant 0 : i32
    %6 = arith.index_cast %c0_i32_6 : i32 to index
    %c0_7 = arith.constant 0 : index
    %c0_8 = arith.constant 0 : index
    %7 = vector.load %arg1[%6, %c0_7, %c0_8] : memref<4x2x128xf32, #tpu.memory_space<vmem>>, vector<1x2x128xf32>
    %8 = vector.shape_cast %7 : vector<1x2x128xf32> to vector<2x128xf32>
    %cst = arith.constant dense<0.000000e+00> : vector<2x128xf32>
    %9 = tpu.matmul %4, %3, %cst {dimension_numbers = #tpu.dot_dimension_numbers<[1], [0], [0], [1], [0, 0, 1, 1], [], []>} : vector<2x32xf32>, vector<32x128xf32>, vector<2x128xf32> -> vector<2x128xf32>
    %10 = arith.addf %8, %9 : vector<2x128xf32>
    %11 = vector.extract_strided_slice %10 {offsets = [0, 0], sizes = [2, 96], strides = [1, 1]} : vector<2x128xf32> to vector<2x96xf32>
    %12 = arith.negf %11 : vector<2x96xf32>
    %13 = math.exp %12 : vector<2x96xf32>
    %cst_9 = arith.constant 1.000000e+00 : f32
    %14 = vector.broadcast %cst_9 : f32 to vector<2x96xf32>
    %15 = arith.addf %14, %13 : vector<2x96xf32>
    %16 = arith.divf %14, %15 : vector<2x96xf32>
    %17 = vector.extract_strided_slice %16 {offsets = [0, 0], sizes = [2, 32], strides = [1, 1]} : vector<2x96xf32> to vector<2x32xf32>
    %18 = vector.extract_strided_slice %16 {offsets = [0, 32], sizes = [2, 32], strides = [1, 1]} : vector<2x96xf32> to vector<2x32xf32>
    %19 = vector.extract_strided_slice %16 {offsets = [0, 64], sizes = [2, 32], strides = [1, 1]} : vector<2x96xf32> to vector<2x32xf32>
    %20 = vector.extract_strided_slice %10 {offsets = [0, 96], sizes = [2, 32], strides = [1, 1]} : vector<2x128xf32> to vector<2x32xf32>
    %21 = math.tanh %20 : vector<2x32xf32>
    %22 = arith.mulf %18, %5 : vector<2x32xf32>
    %23 = arith.mulf %17, %21 : vector<2x32xf32>
    %24 = arith.addf %22, %23 : vector<2x32xf32>
    %25 = math.tanh %24 : vector<2x32xf32>
    %26 = arith.mulf %19, %25 : vector<2x32xf32>
    %27 = arith.index_cast %c0_i32_6 : i32 to index
    %c0_10 = arith.constant 0 : index
    %c0_11 = arith.constant 0 : index
    %28 = vector.load %arg5[%27, %c0_10, %c0_11] : memref<4x2x32xf32, #tpu.memory_space<vmem>>, vector<1x2x32xf32>
    %29 = vector.shape_cast %28 : vector<1x2x32xf32> to vector<2x32xf32>
    %30 = vector.shape_cast %26 : vector<2x32xf32> to vector<1x2x32xf32>
    tpu.vector_store %arg5[%27, %c0_10, %c0_11], %30 {strides = array<i32>} : memref<4x2x32xf32, #tpu.memory_space<vmem>>, vector<1x2x32xf32>,
    %c1_i32 = arith.constant 1 : i32
    %31 = arith.index_cast %c1_i32 : i32 to index
    %c0_12 = arith.constant 0 : index
    %c0_13 = arith.constant 0 : index
    %32 = vector.load %arg1[%31, %c0_12, %c0_13] : memref<4x2x128xf32, #tpu.memory_space<vmem>>, vector<1x2x128xf32>
    %33 = vector.shape_cast %32 : vector<1x2x128xf32> to vector<2x128xf32>
    %cst_14 = arith.constant dense<0.000000e+00> : vector<2x128xf32>
    %34 = tpu.matmul %26, %3, %cst_14 {dimension_numbers = #tpu.dot_dimension_numbers<[1], [0], [0], [1], [0, 0, 1, 1], [], []>} : vector<2x32xf32>, vector<32x128xf32>, vector<2x128xf32> -> vector<2x128xf32>
    %35 = arith.addf %33, %34 : vector<2x128xf32>
    %36 = vector.extract_strided_slice %35 {offsets = [0, 0], sizes = [2, 96], strides = [1, 1]} : vector<2x128xf32> to vector<2x96xf32>
    %37 = arith.negf %36 : vector<2x96xf32>
    %38 = math.exp %37 : vector<2x96xf32>
    %cst_15 = arith.constant 1.000000e+00 : f32
    %39 = vector.broadcast %cst_15 : f32 to vector<2x96xf32>
    %40 = arith.addf %39, %38 : vector<2x96xf32>
    %41 = arith.divf %39, %40 : vector<2x96xf32>
    %42 = vector.extract_strided_slice %41 {offsets = [0, 0], sizes = [2, 32], strides = [1, 1]} : vector<2x96xf32> to vector<2x32xf32>
    %43 = vector.extract_strided_slice %41 {offsets = [0, 32], sizes = [2, 32], strides = [1, 1]} : vector<2x96xf32> to vector<2x32xf32>
    %44 = vector.extract_strided_slice %41 {offsets = [0, 64], sizes = [2, 32], strides = [1, 1]} : vector<2x96xf32> to vector<2x32xf32>
    %45 = vector.extract_strided_slice %35 {offsets = [0, 96], sizes = [2, 32], strides = [1, 1]} : vector<2x128xf32> to vector<2x32xf32>
    %46 = math.tanh %45 : vector<2x32xf32>
    %47 = arith.mulf %43, %24 : vector<2x32xf32>
    %48 = arith.mulf %42, %46 : vector<2x32xf32>
    %49 = arith.addf %47, %48 : vector<2x32xf32>
    %50 = math.tanh %49 : vector<2x32xf32>
    %51 = arith.mulf %44, %50 : vector<2x32xf32>
    %52 = arith.index_cast %c1_i32 : i32 to index
    %c0_16 = arith.constant 0 : index
    %c0_17 = arith.constant 0 : index
    %53 = vector.load %arg5[%52, %c0_16, %c0_17] : memref<4x2x32xf32, #tpu.memory_space<vmem>>, vector<1x2x32xf32>
    %54 = vector.shape_cast %53 : vector<1x2x32xf32> to vector<2x32xf32>
    %55 = vector.shape_cast %51 : vector<2x32xf32> to vector<1x2x32xf32>
    tpu.vector_store %arg5[%52, %c0_16, %c0_17], %55 {strides = array<i32>} : memref<4x2x32xf32, #tpu.memory_space<vmem>>, vector<1x2x32xf32>,
    %c2_i32 = arith.constant 2 : i32
    %56 = arith.index_cast %c2_i32 : i32 to index
    %c0_18 = arith.constant 0 : index
    %c0_19 = arith.constant 0 : index
    %57 = vector.load %arg1[%56, %c0_18, %c0_19] : memref<4x2x128xf32, #tpu.memory_space<vmem>>, vector<1x2x128xf32>
    %58 = vector.shape_cast %57 : vector<1x2x128xf32> to vector<2x128xf32>
    %cst_20 = arith.constant dense<0.000000e+00> : vector<2x128xf32>
    %59 = tpu.matmul %51, %3, %cst_20 {dimension_numbers = #tpu.dot_dimension_numbers<[1], [0], [0], [1], [0, 0, 1, 1], [], []>} : vector<2x32xf32>, vector<32x128xf32>, vector<2x128xf32> -> vector<2x128xf32>
    %60 = arith.addf %58, %59 : vector<2x128xf32>
    %61 = vector.extract_strided_slice %60 {offsets = [0, 0], sizes = [2, 96], strides = [1, 1]} : vector<2x128xf32> to vector<2x96xf32>
    %62 = arith.negf %61 : vector<2x96xf32>
    %63 = math.exp %62 : vector<2x96xf32>
    %cst_21 = arith.constant 1.000000e+00 : f32
    %64 = vector.broadcast %cst_21 : f32 to vector<2x96xf32>
    %65 = arith.addf %64, %63 : vector<2x96xf32>
    %66 = arith.divf %64, %65 : vector<2x96xf32>
    %67 = vector.extract_strided_slice %66 {offsets = [0, 0], sizes = [2, 32], strides = [1, 1]} : vector<2x96xf32> to vector<2x32xf32>
    %68 = vector.extract_strided_slice %66 {offsets = [0, 32], sizes = [2, 32], strides = [1, 1]} : vector<2x96xf32> to vector<2x32xf32>
    %69 = vector.extract_strided_slice %66 {offsets = [0, 64], sizes = [2, 32], strides = [1, 1]} : vector<2x96xf32> to vector<2x32xf32>
    %70 = vector.extract_strided_slice %60 {offsets = [0, 96], sizes = [2, 32], strides = [1, 1]} : vector<2x128xf32> to vector<2x32xf32>
    %71 = math.tanh %70 : vector<2x32xf32>
    %72 = arith.mulf %68, %49 : vector<2x32xf32>
    %73 = arith.mulf %67, %71 : vector<2x32xf32>
    %74 = arith.addf %72, %73 : vector<2x32xf32>
    %75 = math.tanh %74 : vector<2x32xf32>
    %76 = arith.mulf %69, %75 : vector<2x32xf32>
    %77 = arith.index_cast %c2_i32 : i32 to index
    %c0_22 = arith.constant 0 : index
    %c0_23 = arith.constant 0 : index
    %78 = vector.load %arg5[%77, %c0_22, %c0_23] : memref<4x2x32xf32, #tpu.memory_space<vmem>>, vector<1x2x32xf32>
    %79 = vector.shape_cast %78 : vector<1x2x32xf32> to vector<2x32xf32>
    %80 = vector.shape_cast %76 : vector<2x32xf32> to vector<1x2x32xf32>
    tpu.vector_store %arg5[%77, %c0_22, %c0_23], %80 {strides = array<i32>} : memref<4x2x32xf32, #tpu.memory_space<vmem>>, vector<1x2x32xf32>,
    %c3_i32 = arith.constant 3 : i32
    %81 = arith.index_cast %c3_i32 : i32 to index
    %c0_24 = arith.constant 0 : index
    %c0_25 = arith.constant 0 : index
    %82 = vector.load %arg1[%81, %c0_24, %c0_25] : memref<4x2x128xf32, #tpu.memory_space<vmem>>, vector<1x2x128xf32>
    %83 = vector.shape_cast %82 : vector<1x2x128xf32> to vector<2x128xf32>
    %cst_26 = arith.constant dense<0.000000e+00> : vector<2x128xf32>
    %84 = tpu.matmul %76, %3, %cst_26 {dimension_numbers = #tpu.dot_dimension_numbers<[1], [0], [0], [1], [0, 0, 1, 1], [], []>} : vector<2x32xf32>, vector<32x128xf32>, vector<2x128xf32> -> vector<2x128xf32>
    %85 = arith.addf %83, %84 : vector<2x128xf32>
    %86 = vector.extract_strided_slice %85 {offsets = [0, 0], sizes = [2, 96], strides = [1, 1]} : vector<2x128xf32> to vector<2x96xf32>
    %87 = arith.negf %86 : vector<2x96xf32>
    %88 = math.exp %87 : vector<2x96xf32>
    %cst_27 = arith.constant 1.000000e+00 : f32
    %89 = vector.broadcast %cst_27 : f32 to vector<2x96xf32>
    %90 = arith.addf %89, %88 : vector<2x96xf32>
    %91 = arith.divf %89, %90 : vector<2x96xf32>
    %92 = vector.extract_strided_slice %91 {offsets = [0, 0], sizes = [2, 32], strides = [1, 1]} : vector<2x96xf32> to vector<2x32xf32>
    %93 = vector.extract_strided_slice %91 {offsets = [0, 32], sizes = [2, 32], strides = [1, 1]} : vector<2x96xf32> to vector<2x32xf32>
    %94 = vector.extract_strided_slice %91 {offsets = [0, 64], sizes = [2, 32], strides = [1, 1]} : vector<2x96xf32> to vector<2x32xf32>
    %95 = vector.extract_strided_slice %85 {offsets = [0, 96], sizes = [2, 32], strides = [1, 1]} : vector<2x128xf32> to vector<2x32xf32>
    %96 = math.tanh %95 : vector<2x32xf32>
    %97 = arith.mulf %93, %74 : vector<2x32xf32>
    %98 = arith.mulf %92, %96 : vector<2x32xf32>
    %99 = arith.addf %97, %98 : vector<2x32xf32>
    %100 = math.tanh %99 : vector<2x32xf32>
    %101 = arith.mulf %94, %100 : vector<2x32xf32>
    %102 = arith.index_cast %c3_i32 : i32 to index
    %c0_28 = arith.constant 0 : index
    %c0_29 = arith.constant 0 : index
    %103 = vector.load %arg5[%102, %c0_28, %c0_29] : memref<4x2x32xf32, #tpu.memory_space<vmem>>, vector<1x2x32xf32>
    %104 = vector.shape_cast %103 : vector<1x2x32xf32> to vector<2x32xf32>
    %105 = vector.shape_cast %101 : vector<2x32xf32> to vector<1x2x32xf32>
    tpu.vector_store %arg5[%102, %c0_28, %c0_29], %105 {strides = array<i32>} : memref<4x2x32xf32, #tpu.memory_space<vmem>>, vector<1x2x32xf32>,
    %c4_i32 = arith.constant 4 : i32
    %c0_30 = arith.constant 0 : index
    %c0_31 = arith.constant 0 : index
    %106 = vector.load %arg8[%c0_30, %c0_31] : memref<2x32xf32, #tpu.memory_space<vmem>>, vector<2x32xf32>
    tpu.vector_store %arg8[%c0_30, %c0_31], %101 {strides = array<i32>} : memref<2x32xf32, #tpu.memory_space<vmem>>, vector<2x32xf32>,
    %c0_32 = arith.constant 0 : index
    %c0_33 = arith.constant 0 : index
    %107 = vector.load %arg9[%c0_32, %c0_33] : memref<2x32xf32, #tpu.memory_space<vmem>>, vector<2x32xf32>
    tpu.vector_store %arg9[%c0_32, %c0_33], %99 {strides = array<i32>} : memref<2x32xf32, #tpu.memory_space<vmem>>, vector<2x32xf32>,
    %c1_i32_34 = arith.constant 1 : i32
    %108 = arith.cmpi eq, %arg0, %c1_i32_34 : i32
    %109 = arith.extui %108 : i1 to i32
    %c0_i32_35 = arith.constant 0 : i32
    %110 = arith.cmpi ne, %109, %c0_i32_35 : i32
    scf.if %110 {
      %c0_36 = arith.constant 0 : index
      %c0_37 = arith.constant 0 : index
      %111 = vector.load %arg6[%c0_36, %c0_37] : memref<2x32xf32, #tpu.memory_space<vmem>>, vector<2x32xf32>
      tpu.vector_store %arg6[%c0_36, %c0_37], %101 {strides = array<i32>} : memref<2x32xf32, #tpu.memory_space<vmem>>, vector<2x32xf32>,
      %c0_38 = arith.constant 0 : index
      %c0_39 = arith.constant 0 : index
      %112 = vector.load %arg7[%c0_38, %c0_39] : memref<2x32xf32, #tpu.memory_space<vmem>>, vector<2x32xf32>
      tpu.vector_store %arg7[%c0_38, %c0_39], %99 {strides = array<i32>} : memref<2x32xf32, #tpu.memory_space<vmem>>, vector<2x32xf32>,
    } else {
    }
    return
  }
  func.func @transform_0(%arg0: i32) -> (i32, i32, i32) {
    %c0_i32 = arith.constant 0 : i32
    %c0_i32_0 = arith.constant 0 : i32
    %c0_i32_1 = arith.constant 0 : i32
    return %arg0, %c0_i32, %c0_i32_0 : i32, i32, i32
  }
  func.func @transform_1(%arg0: i32) -> (i32, i32) {
    %c0_i32 = arith.constant 0 : i32
    %c0_i32_0 = arith.constant 0 : i32
    %c0_i32_1 = arith.constant 0 : i32
    return %c0_i32, %c0_i32_0 : i32, i32
  }
  func.func @transform_2(%arg0: i32) -> (i32, i32) {
    %c0_i32 = arith.constant 0 : i32
    %c0_i32_0 = arith.constant 0 : i32
    %c0_i32_1 = arith.constant 0 : i32
    return %c0_i32, %c0_i32_0 : i32, i32
  }
  func.func @transform_3(%arg0: i32) -> (i32, i32) {
    %c0_i32 = arith.constant 0 : i32
    %c0_i32_0 = arith.constant 0 : i32
    %c0_i32_1 = arith.constant 0 : i32
    return %c0_i32, %c0_i32_0 : i32, i32
  }
  func.func @transform_4(%arg0: i32) -> (i32, i32, i32) {
    %c0_i32 = arith.constant 0 : i32
    %c0_i32_0 = arith.constant 0 : i32
    %c0_i32_1 = arith.constant 0 : i32
    return %arg0, %c0_i32, %c0_i32_0 : i32, i32, i32
  }
  func.func @transform_5(%arg0: i32) -> (i32, i32) {
    %c0_i32 = arith.constant 0 : i32
    %c0_i32_0 = arith.constant 0 : i32
    %c0_i32_1 = arith.constant 0 : i32
    return %c0_i32, %c0_i32_0 : i32, i32
  }
  func.func @transform_6(%arg0: i32) -> (i32, i32) {
    %c0_i32 = arith.constant 0 : i32
    %c0_i32_0 = arith.constant 0 : i32
    %c0_i32_1 = arith.constant 0 : i32
    return %c0_i32, %c0_i32_0 : i32, i32
  }
}

module attributes {stable_mosaic.version = 11 : i64} {
  func.func @lstm_chunk_kernel(%arg0: i32, %arg1: memref<4x2x128xf32, #tpu.memory_space<vmem>>, %arg2: memref<2x32xf32, #tpu.memory_space<vmem>>, %arg3: memref<2x32xf32, #tpu.memory_space<vmem>>, %arg4: memref<32x128xf32, #tpu.memory_space<vmem>>, %arg5: memref<4x2x32xf32, #tpu.memory_space<vmem>>, %arg6: memref<2x32xf32, #tpu.memory_space<vmem>>, %arg7: memref<2x32xf32, #tpu.memory_space<vmem>>, %arg8: memref<2x32xf32, #tpu.memory_space<vmem>>, %arg9: memref<2x32xf32, #tpu.memory_space<vmem>>) attributes {dimension_semantics = [#tpu.dimension_semantics<arbitrary>], iteration_bounds = array<i64: 2>, scalar_prefetch = 0 : i64, scratch_operands = 2 : i64, tpu.core_type = #tpu.core_type<tc>, window_params = [{transform_indices = @transform_0, window_bounds = array<i64: 4, 2, 128>}, {pipeline_mode = #tpu.pipeline_mode<synchronous>, transform_indices = @transform_1, window_bounds = array<i64: 2, 32>}, {pipeline_mode = #tpu.pipeline_mode<synchronous>, transform_indices = @transform_2, window_bounds = array<i64: 2, 32>}, {pipeline_mode = #tpu.pipeline_mode<synchronous>, transform_indices = @transform_3, window_bounds = array<i64: 32, 128>}, {transform_indices = @transform_4, window_bounds = array<i64: 4, 2, 32>}, {pipeline_mode = #tpu.pipeline_mode<synchronous>, transform_indices = @transform_5, window_bounds = array<i64: 2, 32>}, {pipeline_mode = #tpu.pipeline_mode<synchronous>, transform_indices = @transform_6, window_bounds = array<i64: 2, 32>}]} {
    %c0_i32 = arith.constant 0 : i32
    %0 = arith.cmpi eq, %arg0, %c0_i32 : i32
    %1 = arith.extui %0 : i1 to i32
    %c0_i32_0 = arith.constant 0 : i32
    %2 = arith.cmpi ne, %1, %c0_i32_0 : i32
    scf.if %2 {
      %c0_36 = arith.constant 0 : index
      %c0_37 = arith.constant 0 : index
      %111 = vector.load %arg2[%c0_36, %c0_37] : memref<2x32xf32, #tpu.memory_space<vmem>>, vector<2x32xf32>
      %c0_38 = arith.constant 0 : index
      %c0_39 = arith.constant 0 : index
      %112 = vector.load %arg8[%c0_38, %c0_39] : memref<2x32xf32, #tpu.memory_space<vmem>>, vector<2x32xf32>
      tpu.vector_store %arg8[%c0_38, %c0_39], %111 {strides = array<i32>} : memref<2x32xf32, #tpu.memory_space<vmem>>, vector<2x32xf32>,
      %c0_40 = arith.constant 0 : index
      %c0_41 = arith.constant 0 : index
      %113 = vector.load %arg3[%c0_40, %c0_41] : memref<2x32xf32, #tpu.memory_space<vmem>>, vector<2x32xf32>
      %c0_42 = arith.constant 0 : index
      %c0_43 = arith.constant 0 : index
      %114 = vector.load %arg9[%c0_42, %c0_43] : memref<2x32xf32, #tpu.memory_space<vmem>>, vector<2x32xf32>
      tpu.vector_store %arg9[%c0_42, %c0_43], %113 {strides = array<i32>} : memref<2x32xf32, #tpu.memory_space<vmem>>, vector<2x32xf32>,
    } else {
    }
    %c0 = arith.constant 0 : index
    %c0_1 = arith.constant 0 : index
    %3 = vector.load %arg4[%c0, %c0_1] : memref<32x128xf32, #tpu.memory_space<vmem>>, vector<32x128xf32>
    %c0_2 = arith.constant 0 : index
    %c0_3 = arith.constant 0 : index
    %4 = vector.load %arg8[%c0_2, %c0_3] : memref<2x32xf32, #tpu.memory_space<vmem>>, vector<2x32xf32>
    %c0_4 = arith.constant 0 : index
    %c0_5 = arith.constant 0 : index
    %5 = vector.load %arg9[%c0_4, %c0_5] : memref<2x32xf32, #tpu.memory_space<vmem>>, vector<2x32xf32>
    %c0_i32_6 = arith.constant 0 : i32
    %6 = arith.index_cast %c0_i32_6 : i32 to index
    %c0_7 = arith.constant 0 : index
    %c0_8 = arith.constant 0 : index
    %7 = vector.load %arg1[%6, %c0_7, %c0_8] : memref<4x2x128xf32, #tpu.memory_space<vmem>>, vector<1x2x128xf32>
    %8 = vector.shape_cast %7 : vector<1x2x128xf32> to vector<2x128xf32>
    %cst = arith.constant dense<0.000000e+00> : vector<2x128xf32>
    %9 = tpu.matmul %4, %3, %cst {dimension_numbers = #tpu.dot_dimension_numbers<[1], [0], [0], [1], [0, 0, 1, 1], [], []>} : vector<2x32xf32>, vector<32x128xf32>, vector<2x128xf32> -> vector<2x128xf32>
    %10 = arith.addf %8, %9 : vector<2x128xf32>
    %11 = vector.extract_strided_slice %10 {offsets = [0, 0], sizes = [2, 96], strides = [1, 1]} : vector<2x128xf32> to vector<2x96xf32>
    %12 = arith.negf %11 : vector<2x96xf32>
    %13 = math.exp %12 : vector<2x96xf32>
    %cst_9 = arith.constant 1.000000e+00 : f32
    %14 = vector.broadcast %cst_9 : f32 to vector<2x96xf32>
    %15 = arith.addf %14, %13 : vector<2x96xf32>
    %16 = arith.divf %14, %15 : vector<2x96xf32>
    %17 = vector.extract_strided_slice %16 {offsets = [0, 0], sizes = [2, 32], strides = [1, 1]} : vector<2x96xf32> to vector<2x32xf32>
    %18 = vector.extract_strided_slice %16 {offsets = [0, 32], sizes = [2, 32], strides = [1, 1]} : vector<2x96xf32> to vector<2x32xf32>
    %19 = vector.extract_strided_slice %16 {offsets = [0, 64], sizes = [2, 32], strides = [1, 1]} : vector<2x96xf32> to vector<2x32xf32>
    %20 = vector.extract_strided_slice %10 {offsets = [0, 96], sizes = [2, 32], strides = [1, 1]} : vector<2x128xf32> to vector<2x32xf32>
    %21 = math.tanh %20 : vector<2x32xf32>
    %22 = arith.mulf %18, %5 : vector<2x32xf32>
    %23 = arith.mulf %17, %21 : vector<2x32xf32>
    %24 = arith.addf %22, %23 : vector<2x32xf32>
    %25 = math.tanh %24 : vector<2x32xf32>
    %26 = arith.mulf %19, %25 : vector<2x32xf32>
    %27 = arith.index_cast %c0_i32_6 : i32 to index
    %c0_10 = arith.constant 0 : index
    %c0_11 = arith.constant 0 : index
    %28 = vector.load %arg5[%27, %c0_10, %c0_11] : memref<4x2x32xf32, #tpu.memory_space<vmem>>, vector<1x2x32xf32>
    %29 = vector.shape_cast %28 : vector<1x2x32xf32> to vector<2x32xf32>
    %30 = vector.shape_cast %26 : vector<2x32xf32> to vector<1x2x32xf32>
    tpu.vector_store %arg5[%27, %c0_10, %c0_11], %30 {strides = array<i32>} : memref<4x2x32xf32, #tpu.memory_space<vmem>>, vector<1x2x32xf32>,
    %c1_i32 = arith.constant 1 : i32
    %31 = arith.index_cast %c1_i32 : i32 to index
    %c0_12 = arith.constant 0 : index
    %c0_13 = arith.constant 0 : index
    %32 = vector.load %arg1[%31, %c0_12, %c0_13] : memref<4x2x128xf32, #tpu.memory_space<vmem>>, vector<1x2x128xf32>
    %33 = vector.shape_cast %32 : vector<1x2x128xf32> to vector<2x128xf32>
    %cst_14 = arith.constant dense<0.000000e+00> : vector<2x128xf32>
    %34 = tpu.matmul %26, %3, %cst_14 {dimension_numbers = #tpu.dot_dimension_numbers<[1], [0], [0], [1], [0, 0, 1, 1], [], []>} : vector<2x32xf32>, vector<32x128xf32>, vector<2x128xf32> -> vector<2x128xf32>
    %35 = arith.addf %33, %34 : vector<2x128xf32>
    %36 = vector.extract_strided_slice %35 {offsets = [0, 0], sizes = [2, 96], strides = [1, 1]} : vector<2x128xf32> to vector<2x96xf32>
    %37 = arith.negf %36 : vector<2x96xf32>
    %38 = math.exp %37 : vector<2x96xf32>
    %cst_15 = arith.constant 1.000000e+00 : f32
    %39 = vector.broadcast %cst_15 : f32 to vector<2x96xf32>
    %40 = arith.addf %39, %38 : vector<2x96xf32>
    %41 = arith.divf %39, %40 : vector<2x96xf32>
    %42 = vector.extract_strided_slice %41 {offsets = [0, 0], sizes = [2, 32], strides = [1, 1]} : vector<2x96xf32> to vector<2x32xf32>
    %43 = vector.extract_strided_slice %41 {offsets = [0, 32], sizes = [2, 32], strides = [1, 1]} : vector<2x96xf32> to vector<2x32xf32>
    %44 = vector.extract_strided_slice %41 {offsets = [0, 64], sizes = [2, 32], strides = [1, 1]} : vector<2x96xf32> to vector<2x32xf32>
    %45 = vector.extract_strided_slice %35 {offsets = [0, 96], sizes = [2, 32], strides = [1, 1]} : vector<2x128xf32> to vector<2x32xf32>
    %46 = math.tanh %45 : vector<2x32xf32>
    %47 = arith.mulf %43, %24 : vector<2x32xf32>
    %48 = arith.mulf %42, %46 : vector<2x32xf32>
    %49 = arith.addf %47, %48 : vector<2x32xf32>
    %50 = math.tanh %49 : vector<2x32xf32>
    %51 = arith.mulf %44, %50 : vector<2x32xf32>
    %52 = arith.index_cast %c1_i32 : i32 to index
    %c0_16 = arith.constant 0 : index
    %c0_17 = arith.constant 0 : index
    %53 = vector.load %arg5[%52, %c0_16, %c0_17] : memref<4x2x32xf32, #tpu.memory_space<vmem>>, vector<1x2x32xf32>
    %54 = vector.shape_cast %53 : vector<1x2x32xf32> to vector<2x32xf32>
    %55 = vector.shape_cast %51 : vector<2x32xf32> to vector<1x2x32xf32>
    tpu.vector_store %arg5[%52, %c0_16, %c0_17], %55 {strides = array<i32>} : memref<4x2x32xf32, #tpu.memory_space<vmem>>, vector<1x2x32xf32>,
    %c2_i32 = arith.constant 2 : i32
    %56 = arith.index_cast %c2_i32 : i32 to index
    %c0_18 = arith.constant 0 : index
    %c0_19 = arith.constant 0 : index
    %57 = vector.load %arg1[%56, %c0_18, %c0_19] : memref<4x2x128xf32, #tpu.memory_space<vmem>>, vector<1x2x128xf32>
    %58 = vector.shape_cast %57 : vector<1x2x128xf32> to vector<2x128xf32>
    %cst_20 = arith.constant dense<0.000000e+00> : vector<2x128xf32>
    %59 = tpu.matmul %51, %3, %cst_20 {dimension_numbers = #tpu.dot_dimension_numbers<[1], [0], [0], [1], [0, 0, 1, 1], [], []>} : vector<2x32xf32>, vector<32x128xf32>, vector<2x128xf32> -> vector<2x128xf32>
    %60 = arith.addf %58, %59 : vector<2x128xf32>
    %61 = vector.extract_strided_slice %60 {offsets = [0, 0], sizes = [2, 96], strides = [1, 1]} : vector<2x128xf32> to vector<2x96xf32>
    %62 = arith.negf %61 : vector<2x96xf32>
    %63 = math.exp %62 : vector<2x96xf32>
    %cst_21 = arith.constant 1.000000e+00 : f32
    %64 = vector.broadcast %cst_21 : f32 to vector<2x96xf32>
    %65 = arith.addf %64, %63 : vector<2x96xf32>
    %66 = arith.divf %64, %65 : vector<2x96xf32>
    %67 = vector.extract_strided_slice %66 {offsets = [0, 0], sizes = [2, 32], strides = [1, 1]} : vector<2x96xf32> to vector<2x32xf32>
    %68 = vector.extract_strided_slice %66 {offsets = [0, 32], sizes = [2, 32], strides = [1, 1]} : vector<2x96xf32> to vector<2x32xf32>
    %69 = vector.extract_strided_slice %66 {offsets = [0, 64], sizes = [2, 32], strides = [1, 1]} : vector<2x96xf32> to vector<2x32xf32>
    %70 = vector.extract_strided_slice %60 {offsets = [0, 96], sizes = [2, 32], strides = [1, 1]} : vector<2x128xf32> to vector<2x32xf32>
    %71 = math.tanh %70 : vector<2x32xf32>
    %72 = arith.mulf %68, %49 : vector<2x32xf32>
    %73 = arith.mulf %67, %71 : vector<2x32xf32>
    %74 = arith.addf %72, %73 : vector<2x32xf32>
    %75 = math.tanh %74 : vector<2x32xf32>
    %76 = arith.mulf %69, %75 : vector<2x32xf32>
    %77 = arith.index_cast %c2_i32 : i32 to index
    %c0_22 = arith.constant 0 : index
    %c0_23 = arith.constant 0 : index
    %78 = vector.load %arg5[%77, %c0_22, %c0_23] : memref<4x2x32xf32, #tpu.memory_space<vmem>>, vector<1x2x32xf32>
    %79 = vector.shape_cast %78 : vector<1x2x32xf32> to vector<2x32xf32>
    %80 = vector.shape_cast %76 : vector<2x32xf32> to vector<1x2x32xf32>
    tpu.vector_store %arg5[%77, %c0_22, %c0_23], %80 {strides = array<i32>} : memref<4x2x32xf32, #tpu.memory_space<vmem>>, vector<1x2x32xf32>,
    %c3_i32 = arith.constant 3 : i32
    %81 = arith.index_cast %c3_i32 : i32 to index
    %c0_24 = arith.constant 0 : index
    %c0_25 = arith.constant 0 : index
    %82 = vector.load %arg1[%81, %c0_24, %c0_25] : memref<4x2x128xf32, #tpu.memory_space<vmem>>, vector<1x2x128xf32>
    %83 = vector.shape_cast %82 : vector<1x2x128xf32> to vector<2x128xf32>
    %cst_26 = arith.constant dense<0.000000e+00> : vector<2x128xf32>
    %84 = tpu.matmul %76, %3, %cst_26 {dimension_numbers = #tpu.dot_dimension_numbers<[1], [0], [0], [1], [0, 0, 1, 1], [], []>} : vector<2x32xf32>, vector<32x128xf32>, vector<2x128xf32> -> vector<2x128xf32>
    %85 = arith.addf %83, %84 : vector<2x128xf32>
    %86 = vector.extract_strided_slice %85 {offsets = [0, 0], sizes = [2, 96], strides = [1, 1]} : vector<2x128xf32> to vector<2x96xf32>
    %87 = arith.negf %86 : vector<2x96xf32>
    %88 = math.exp %87 : vector<2x96xf32>
    %cst_27 = arith.constant 1.000000e+00 : f32
    %89 = vector.broadcast %cst_27 : f32 to vector<2x96xf32>
    %90 = arith.addf %89, %88 : vector<2x96xf32>
    %91 = arith.divf %89, %90 : vector<2x96xf32>
    %92 = vector.extract_strided_slice %91 {offsets = [0, 0], sizes = [2, 32], strides = [1, 1]} : vector<2x96xf32> to vector<2x32xf32>
    %93 = vector.extract_strided_slice %91 {offsets = [0, 32], sizes = [2, 32], strides = [1, 1]} : vector<2x96xf32> to vector<2x32xf32>
    %94 = vector.extract_strided_slice %91 {offsets = [0, 64], sizes = [2, 32], strides = [1, 1]} : vector<2x96xf32> to vector<2x32xf32>
    %95 = vector.extract_strided_slice %85 {offsets = [0, 96], sizes = [2, 32], strides = [1, 1]} : vector<2x128xf32> to vector<2x32xf32>
    %96 = math.tanh %95 : vector<2x32xf32>
    %97 = arith.mulf %93, %74 : vector<2x32xf32>
    %98 = arith.mulf %92, %96 : vector<2x32xf32>
    %99 = arith.addf %97, %98 : vector<2x32xf32>
    %100 = math.tanh %99 : vector<2x32xf32>
    %101 = arith.mulf %94, %100 : vector<2x32xf32>
    %102 = arith.index_cast %c3_i32 : i32 to index
    %c0_28 = arith.constant 0 : index
    %c0_29 = arith.constant 0 : index
    %103 = vector.load %arg5[%102, %c0_28, %c0_29] : memref<4x2x32xf32, #tpu.memory_space<vmem>>, vector<1x2x32xf32>
    %104 = vector.shape_cast %103 : vector<1x2x32xf32> to vector<2x32xf32>
    %105 = vector.shape_cast %101 : vector<2x32xf32> to vector<1x2x32xf32>
    tpu.vector_store %arg5[%102, %c0_28, %c0_29], %105 {strides = array<i32>} : memref<4x2x32xf32, #tpu.memory_space<vmem>>, vector<1x2x32xf32>,
    %c4_i32 = arith.constant 4 : i32
    %c0_30 = arith.constant 0 : index
    %c0_31 = arith.constant 0 : index
    %106 = vector.load %arg8[%c0_30, %c0_31] : memref<2x32xf32, #tpu.memory_space<vmem>>, vector<2x32xf32>
    tpu.vector_store %arg8[%c0_30, %c0_31], %101 {strides = array<i32>} : memref<2x32xf32, #tpu.memory_space<vmem>>, vector<2x32xf32>,
    %c0_32 = arith.constant 0 : index
    %c0_33 = arith.constant 0 : index
    %107 = vector.load %arg9[%c0_32, %c0_33] : memref<2x32xf32, #tpu.memory_space<vmem>>, vector<2x32xf32>
    tpu.vector_store %arg9[%c0_32, %c0_33], %99 {strides = array<i32>} : memref<2x32xf32, #tpu.memory_space<vmem>>, vector<2x32xf32>,
    %c1_i32_34 = arith.constant 1 : i32
    %108 = arith.cmpi eq, %arg0, %c1_i32_34 : i32
    %109 = arith.extui %108 : i1 to i32
    %c0_i32_35 = arith.constant 0 : i32
    %110 = arith.cmpi ne, %109, %c0_i32_35 : i32
    scf.if %110 {
      %c0_36 = arith.constant 0 : index
      %c0_37 = arith.constant 0 : index
      %111 = vector.load %arg6[%c0_36, %c0_37] : memref<2x32xf32, #tpu.memory_space<vmem>>, vector<2x32xf32>
      tpu.vector_store %arg6[%c0_36, %c0_37], %101 {strides = array<i32>} : memref<2x32xf32, #tpu.memory_space<vmem>>, vector<2x32xf32>,
      %c0_38 = arith.constant 0 : index
      %c0_39 = arith.constant 0 : index
      %112 = vector.load %arg7[%c0_38, %c0_39] : memref<2x32xf32, #tpu.memory_space<vmem>>, vector<2x32xf32>
      tpu.vector_store %arg7[%c0_38, %c0_39], %99 {strides = array<i32>} : memref<2x32xf32, #tpu.memory_space<vmem>>, vector<2x32xf32>,
    } else {
    }
    return
  }
  func.func @transform_0(%arg0: i32) -> (i32, i32, i32) {
    %c0_i32 = arith.constant 0 : i32
    %c0_i32_0 = arith.constant 0 : i32
    %c0_i32_1 = arith.constant 0 : i32
    return %arg0, %c0_i32, %c0_i32_0 : i32, i32, i32
  }
  func.func @transform_1(%arg0: i32) -> (i32, i32) {
    %c0_i32 = arith.constant 0 : i32
    %c0_i32_0 = arith.constant 0 : i32
    %c0_i32_1 = arith.constant 0 : i32
    return %c0_i32, %c0_i32_0 : i32, i32
  }
  func.func @transform_2(%arg0: i32) -> (i32, i32) {
    %c0_i32 = arith.constant 0 : i32
    %c0_i32_0 = arith.constant 0 : i32
    %c0_i32_1 = arith.constant 0 : i32
    return %c0_i32, %c0_i32_0 : i32, i32
  }
  func.func @transform_3(%arg0: i32) -> (i32, i32) {
    %c0_i32 = arith.constant 0 : i32
    %c0_i32_0 = arith.constant 0 : i32
    %c0_i32_1 = arith.constant 0 : i32
    return %c0_i32, %c0_i32_0 : i32, i32
  }
  func.func @transform_4(%arg0: i32) -> (i32, i32, i32) {
    %c0_i32 = arith.constant 0 : i32
    %c0_i32_0 = arith.constant 0 : i32
    %c0_i32_1 = arith.constant 0 : i32
    return %arg0, %c0_i32, %c0_i32_0 : i32, i32, i32
  }
  func.func @transform_5(%arg0: i32) -> (i32, i32) {
    %c0_i32 = arith.constant 0 : i32
    %c0_i32_0 = arith.constant 0 : i32
    %c0_i32_1 = arith.constant 0 : i32
    return %c0_i32, %c0_i32_0 : i32, i32
  }
  func.func @transform_6(%arg0: i32) -> (i32, i32) {
    %c0_i32 = arith.constant 0 : i32
    %c0_i32_0 = arith.constant 0 : i32
    %c0_i32_1 = arith.constant 0 : i32
    return %c0_i32, %c0_i32_0 : i32, i32
  }
}

</mosaic_0001>

<llo_original>
// kernel: encoder_forward.3
$region0: #{encoder_forward.3}
  #allocation0 [shape = 'u32[]', space=smem, size = 0x4, offset = 0x4, fixed_abs, tag = 'smem constant byte address 0x4 - core index']
  #allocation1 [shape = 'u32[144,128]{1,0:T(1,128)}', space=vmem, size = 0x12000, scoped, tag = 'internal scratch']
  #allocation2 [shape = 'f32[2,32]{1,0:T(2,128)}', space=vmem, size = 0x400, scoped, tag = 'scratch operand']
  #allocation3 [shape = 'f32[2,32]{1,0:T(2,128)}', space=vmem, size = 0x400, scoped, tag = 'scratch operand']
  %s0 = inlined_call_operand.vmem [shape: f32[8,2,128], index: 0, kind: input, shape index: {}]
  %s1 = inlined_call_operand.vmem [shape: f32[2,32], index: 1, kind: input, shape index: {}]
  %s2 = inlined_call_operand.vmem [shape: f32[2,32], index: 2, kind: input, shape index: {}]
  %s3 = inlined_call_operand.vmem [shape: f32[32,128], index: 3, kind: input, shape index: {}]
  %s4 = inlined_call_operand.hbm [shape: f32[8,2,32], index: 4, kind: output, shape index: {0}]
  %s5 = inlined_call_operand.vmem [shape: f32[2,32], index: 5, kind: output, shape index: {1}]
  %s6 = inlined_call_operand.vmem [shape: f32[2,32], index: 6, kind: output, shape index: {2}]
  %7 = xla_tuple %s4, %s5, %s6
  %s8 = sld [smem:[#allocation0]]
  $region73: #{encoder_forward.3} parent=0
    _
  %s10 = ssub.s32 1, %s8
  %s11 = scalar_select 0, %s10, %s8
  $region1: #{encoder_forward.3} parent=0
    #allocation4 [shape = 'u8[8192]{0}', space=vmem, size = 0x2000, scoped, tag = 'output window, operand 0']
    #allocation5 [shape = 's32[2]{0}', space=sflag, size = 0x8, scoped, tag = 'scoped memory for encoder_forward.3']
    %12 = vsyncpa [#allocation5], 0
    %s13 = scalar_lea.sflag [#allocation5], 1
    %14 = vsyncpa %s13, 0
    loop: start=0, step=1, limit=4
    $region2: #{encoder_forward.3} parent=1 // loop_pre_header
      _
    $region3: #{encoder_forward.3} parent=1 // loop_header
      %s16 = sphi 0, %s20
      %p17 = scmp.ge.s32.totalorder %s16, 4
      %s26 = sphi 0, %s28
      %s29 = sphi 0, %s26
      %s30 = sphi 0, %s29
      %s46 = sphi 0, %s30
      %s50 = sphi 0, %s50
      %s52 = sphi 0, %s50
      %s53 = sphi 0, %s52
      %s67 = sphi 0, %s53
      %s71 = sphi 0, %s71
      %s73 = sphi 0, %s71
      %s74 = sphi 0, %s73
      %s88 = sphi 0, %s74
      %s92 = sphi 0, %s92
      %s94 = sphi 0, %s92
      %s95 = sphi 0, %s94
      %s109 = sphi 0, %s95
      %s115 = sphi 0, %s117
      %s118 = sphi 0, %s115
      %s119 = sphi 0, %s118
      %s135 = sphi 0, %s119
      %s139 = sphi 0, %s139
      %s141 = sphi 0, %s139
      %s142 = sphi 0, %s141
      %s156 = sphi 0, %s142
      %s160 = sphi 0, %s160
      %s162 = sphi 0, %s160
      %s163 = sphi 0, %s162
      %s177 = sphi 0, %s163
    $region4: #{encoder_forward.3} parent=1 // loop_header_branch
      %19 = sbr.rel (%p17) target = $region8
    $region5: #{encoder_forward.3} parent=1 // loop_body
      %s21 = ssub.s32 %s16, 1
      %s22 = ssub.s32 %s16, 2
      %s23 = sadd.s32 %s16, 1
      %s24 = ssub.s32 %s16, %s23
      %p25 = scmp.eq.s32.totalorder %s24, 0
      %s27 = sadd.s32 %s26, 1
      %s28 = scalar_select %p25, %s26, %s27
      %p31 = pneg %p25
      %p32 = scmp.eq.s32.totalorder %s16, 1
      %p33 = por %p31, %p32
      %p34 = scmp.ne.s32.totalorder %s26, %s29
      %p35 = scmp.eq.s32.totalorder %s16, 0
      %p36 = por %p34, %p35
      %p37 = scmp.ne.s32.totalorder %s26, %s29
      %p38 = scmp.eq.s32.totalorder %s21, 1
      %p39 = por %p37, %p38
      %p40 = scmp.ne.s32.totalorder %s29, %s30
      %p41 = scmp.eq.s32.totalorder %s21, 0
      %p42 = por %p40, %p41
      %p43 = scmp.ne.s32.totalorder %s29, %s30
      %p44 = scmp.eq.s32.totalorder %s22, 1
      %p45 = por %p43, %p44
      %p47 = scmp.ne.s32.totalorder %s30, %s46
      %p48 = scmp.eq.s32.totalorder %s22, 0
      %p49 = por %p47, %p48
      %s51 = sadd.s32 %s50, 1
      %p54 = scmp.eq.s32.totalorder %s16, 1
      %p55 = scmp.ne.s32.totalorder %s50, %s52
      %p56 = scmp.eq.s32.totalorder %s16, 0
      %p57 = por %p55, %p56
      %p58 = scmp.ne.s32.totalorder %s50, %s52
      %p59 = scmp.eq.s32.totalorder %s21, 1
      %p60 = por %p58, %p59
      %p61 = scmp.ne.s32.totalorder %s52, %s53
      %p62 = scmp.eq.s32.totalorder %s21, 0
      %p63 = por %p61, %p62
      %p64 = scmp.ne.s32.totalorder %s52, %s53
      %p65 = scmp.eq.s32.totalorder %s22, 1
      %p66 = por %p64, %p65
      %p68 = scmp.ne.s32.totalorder %s53, %s67
      %p69 = scmp.eq.s32.totalorder %s22, 0
      %p70 = por %p68, %p69
      %s72 = sadd.s32 %s71, 1
      %p75 = scmp.eq.s32.totalorder %s16, 1
      %p76 = scmp.ne.s32.totalorder %s71, %s73
      %p77 = scmp.eq.s32.totalorder %s16, 0
      %p78 = por %p76, %p77
      %p79 = scmp.ne.s32.totalorder %s71, %s73
      %p80 = scmp.eq.s32.totalorder %s21, 1
      %p81 = por %p79, %p80
      %p82 = scmp.ne.s32.totalorder %s73, %s74
      %p83 = scmp.eq.s32.totalorder %s21, 0
      %p84 = por %p82, %p83
      %p85 = scmp.ne.s32.totalorder %s73, %s74
      %p86 = scmp.eq.s32.totalorder %s22, 1
      %p87 = por %p85, %p86
      %p89 = scmp.ne.s32.totalorder %s74, %s88
      %p90 = scmp.eq.s32.totalorder %s22, 0
      %p91 = por %p89, %p90
      %s93 = sadd.s32 %s92, 1
      %p96 = scmp.eq.s32.totalorder %s16, 1
      %p97 = scmp.ne.s32.totalorder %s92, %s94
      %p98 = scmp.eq.s32.totalorder %s16, 0
      %p99 = por %p97, %p98
      %p100 = scmp.ne.s32.totalorder %s92, %s94
      %p101 = scmp.eq.s32.totalorder %s21, 1
      %p102 = por %p100, %p101
      %p103 = scmp.ne.s32.totalorder %s94, %s95
      %p104 = scmp.eq.s32.totalorder %s21, 0
      %p105 = por %p103, %p104
      %p106 = scmp.ne.s32.totalorder %s94, %s95
      %p107 = scmp.eq.s32.totalorder %s22, 1
      %p108 = por %p106, %p107
      %p110 = scmp.ne.s32.totalorder %s95, %s109
      %p111 = scmp.eq.s32.totalorder %s22, 0
      %p112 = por %p110, %p111
      %s113 = ssub.s32 %s16, %s23
      %p114 = scmp.eq.s32.totalorder %s113, 0
      %s116 = sadd.s32 %s115, 1
      %s117 = scalar_select %p114, %s115, %s116
      %p120 = pneg %p114
      %p121 = scmp.eq.s32.totalorder %s16, 1
      %p122 = por %p120, %p121
      %p123 = scmp.ne.s32.totalorder %s115, %s118
      %p124 = scmp.eq.s32.totalorder %s16, 0
      %p125 = por %p123, %p124
      %p126 = scmp.ne.s32.totalorder %s115, %s118
      %p127 = scmp.eq.s32.totalorder %s21, 1
      %p128 = por %p126, %p127
      %p129 = scmp.ne.s32.totalorder %s118, %s119
      %p130 = scmp.eq.s32.totalorder %s21, 0
      %p131 = por %p129, %p130
      %p132 = scmp.ne.s32.totalorder %s118, %s119
      %p133 = scmp.eq.s32.totalorder %s22, 1
      %p134 = por %p132, %p133
      %p136 = scmp.ne.s32.totalorder %s119, %s135
      %p137 = scmp.eq.s32.totalorder %s22, 0
      %p138 = por %p136, %p137
      %s140 = sadd.s32 %s139, 1
      %p143 = scmp.eq.s32.totalorder %s16, 1
      %p144 = scmp.ne.s32.totalorder %s139, %s141
      %p145 = scmp.eq.s32.totalorder %s16, 0
      %p146 = por %p144, %p145
      %p147 = scmp.ne.s32.totalorder %s139, %s141
      %p148 = scmp.eq.s32.totalorder %s21, 1
      %p149 = por %p147, %p148
      %p150 = scmp.ne.s32.totalorder %s141, %s142
      %p151 = scmp.eq.s32.totalorder %s21, 0
      %p152 = por %p150, %p151
      %p153 = scmp.ne.s32.totalorder %s141, %s142
      %p154 = scmp.eq.s32.totalorder %s22, 1
      %p155 = por %p153, %p154
      %p157 = scmp.ne.s32.totalorder %s142, %s156
      %p158 = scmp.eq.s32.totalorder %s22, 0
      %p159 = por %p157, %p158
      %s161 = sadd.s32 %s160, 1
      %p164 = scmp.eq.s32.totalorder %s16, 1
      %p165 = scmp.ne.s32.totalorder %s160, %s162
      %p166 = scmp.eq.s32.totalorder %s16, 0
      %p167 = por %p165, %p166
      %p168 = scmp.ne.s32.totalorder %s160, %s162
      %p169 = scmp.eq.s32.totalorder %s21, 1
      %p170 = por %p168, %p169
      %p171 = scmp.ne.s32.totalorder %s162, %s163
      %p172 = scmp.eq.s32.totalorder %s21, 0
      %p173 = por %p171, %p172
      %p174 = scmp.ne.s32.totalorder %s162, %s163
      %p175 = scmp.eq.s32.totalorder %s22, 1
      %p176 = por %p174, %p175
      %p178 = scmp.ne.s32.totalorder %s163, %s177
      %p179 = scmp.eq.s32.totalorder %s22, 0
      %p180 = por %p178, %p179
      %p181 = scmp.le.s32.totalorder 1, %s16
      %p182 = scmp.lt.s32.totalorder %s16, 3
      %p183 = pnand %p181, %p182
      %p184 = pneg %p183
      // Predicated region
      $region9: #{encoder_forward.3} parent=5 // pred_check
        _
      $region10: #{encoder_forward.3} parent=5 // pred_check_branch
        %186 = sbr.rel (%p183) target = $region12
      $region11: #{encoder_forward.3} parent=5 // pred_region
        %s187 = ssub.s32 %s16, 1
        // Predicated region
        $region13: #{encoder_forward.3} parent=11 // pred_check
          %p188 = pneg %p63
        $region14: #{encoder_forward.3} parent=11 // pred_check_branch
          %190 = sbr.rel (%p188) target = $region16
        $region15: #{encoder_forward.3} parent=11 // pred_region
          _
        $region16: #{encoder_forward.3} parent=11 // pred_fallthru
          _
        // Predicated region
        $region17: #{encoder_forward.3} parent=11 // pred_check
          %p191 = pneg %p84
        $region18: #{encoder_forward.3} parent=11 // pred_check_branch
          %193 = sbr.rel (%p191) target = $region20
        $region19: #{encoder_forward.3} parent=11 // pred_region
          _
        $region20: #{encoder_forward.3} parent=11 // pred_fallthru
          _
        // Predicated region
        $region21: #{encoder_forward.3} parent=11 // pred_check
          %p194 = pneg %p105
        $region22: #{encoder_forward.3} parent=11 // pred_check_branch
          %196 = sbr.rel (%p194) target = $region24
        $region23: #{encoder_forward.3} parent=11 // pred_region
          _
        $region24: #{encoder_forward.3} parent=11 // pred_fallthru
          _
      $region12: #{encoder_forward.3} parent=5 // pred_fallthru
        _
      %p197 = scmp.lt.s32.totalorder %s16, 2
      // Predicated region
      $region25: #{encoder_forward.3} parent=5 // pred_check
        %p198 = pneg %p197
      $region26: #{encoder_forward.3} parent=5 // pred_check_branch
        %200 = sbr.rel (%p198) target = $region28
      $region27: #{encoder_forward.3} parent=5 // pred_region
        // Predicated region
        $region29: #{encoder_forward.3} parent=27 // pred_check
          %p201 = pneg %p36
        $region30: #{encoder_forward.3} parent=27 // pred_check_branch
          %203 = sbr.rel (%p201) target = $region32
        $region31: #{encoder_forward.3} parent=27 // pred_region
          %s204 = smul.u32 4, %s16
          %p205 = scmp.lt.s32.totalorder %s204, 7
          %s206 = scalar_select %p205, %s204, 7
          %s207 = smul.addr %s206, 2
          %s208 = scalar_lea.vmem %s0, %s207
          %s209 = smul.u32 4, %s16
        $region32: #{encoder_forward.3} parent=27 // pred_fallthru
          _
      $region28: #{encoder_forward.3} parent=5 // pred_fallthru
        _
      %p210 = scmp.le.s32.totalorder 1, %s16
      %p211 = scmp.lt.s32.totalorder %s16, 3
      %p212 = pnand %p210, %p211
      %p213 = pneg %p212
      // Predicated region
      $region33: #{encoder_forward.3} parent=5 // pred_check
        _
      $region34: #{encoder_forward.3} parent=5 // pred_check_branch
        %215 = sbr.rel (%p212) target = $region36
      $region35: #{encoder_forward.3} parent=5 // pred_region
        %s216 = ssub.s32 %s16, 1
        %s217 = smul.u32 4, %s21
        %p218 = scmp.lt.s32.totalorder %s217, 7
        %s219 = scalar_select %p218, %s217, 7
        %s220 = smul.addr %s219, 2
        %s221 = scalar_lea.vmem %s0, %s220
        %p222 = pneg %p42
        %p223 = pneg %p39
        %p224 = pneg %p63
        %p225 = pneg %p60
        %p226 = pneg %p84
        %p227 = pneg %p81
        %p228 = pneg %p105
        %p229 = pneg %p102
        %p230 = pneg %p131
        %p231 = pneg %p128
        %s232 = sand.u32 %s118, 1
        %s233 = scalar_lea.sflag [#allocation5], %s232
        %s234 = sand.u32 %s118, 1
        %s235 = smul.addr %s234, 8
        %s236 = scalar_lea.vmem [#allocation4], %s235
        %p237 = pneg %p152
        %p238 = pneg %p149
        %p239 = pneg %p173
        %p240 = pneg %p170
        %s241 = smul.u32 4, %s21
        %p242 = scmp.lt.s32.totalorder %s241, 7
        %s243 = scalar_select %p242, %s241, 7
        %s244 = smul.addr %s243, 2
        %s245 = scalar_lea.vmem %s0, %s244
        %s246 = smul.u32 4, %s21
        %s247 = smul.u32 4, %s21
        %p248 = scmp.eq.s32.totalorder %s21, 0
        // Predicated region
        $region37: #{encoder_forward.3} parent=35 // pred_check
          %p249 = pneg %p248
        $region38: #{encoder_forward.3} parent=35 // pred_check_branch
          %251 = sbr.rel (%p249) target = $region40
        $region39: #{encoder_forward.3} parent=35 // pred_region
          %v252 = vld [vmem:[%s1] sm:$0x3]
          %vm253 = vcmask 254976
          %254 = vst.msk [vmem:[#allocation2] sm:$0x3] %vm253, %v252
          %v255 = vld [vmem:[%s2] sm:$0x3]
          %256 = vst.msk [vmem:[#allocation3] sm:$0x3] %vm253, %v255
        $region40: #{encoder_forward.3} parent=35 // pred_fallthru
          _
        %v257 = vld [vmem:[%s3] sm:$0xff]
        %v258 = vld [vmem:[%s3 + $0x8] sm:$0xff]
        %v259 = vld [vmem:[%s3 + $0x10] sm:$0xff]
        %v260 = vld [vmem:[%s3 + $0x18] sm:$0xff]
        %v261 = vld [vmem:[#allocation2] sm:$0x3]
        %v262 = vld [vmem:[#allocation3] sm:$0x3]
        %v263 = vld [vmem:[%s245] sm:$0x3]
        %vm264 = vcmask 261120
        %v266 = vsel %vm264, %v261, 0
        %268 = vmatprep.subr.mxu0 0.0
        %269 = vmatpush1.msra.mxu0 %v257
        %270 = vmatprep.subr.mxu0 0.0
        %271 = vmatpush1.msra.mxu0 %v258
        %272 = vmatprep.subr.mxu0 0.0
        %273 = vmatpush1.msra.mxu0 %v259
        %274 = vmatprep.subr.mxu0 0.0
        %275 = vmatpush1.msra.mxu0 %v260
        %276 = vmatprep.subr.mxu0 0.0
        %277 = vmatpush1.msra.mxu0 0.0
        %278 = vmatprep.subr.mxu0 0.0
        %279 = vmatpush1.msra.mxu0 0.0
        %280 = vmatprep.subr.mxu0 0.0
        %281 = vmatpush1.msra.mxu0 0.0
        %282 = vmatprep.subr.mxu0 0.0
        %283 = vmatpush1.msra.mxu0 0.0
        %284 = vmatprep.subr.mxu0 0.0
        %285 = vmatpush1.msra.mxu0 0.0
        %286 = vmatprep.subr.mxu0 0.0
        %287 = vmatpush1.msra.mxu0 0.0
        %288 = vmatprep.subr.mxu0 0.0
        %289 = vmatpush1.msra.mxu0 0.0
        %290 = vmatprep.subr.mxu0 0.0
        %291 = vmatpush1.msra.mxu0 0.0
        %292 = vmatprep.subr.mxu0 0.0
        %293 = vmatpush1.msra.mxu0 0.0
        %294 = vmatprep.subr.mxu0 0.0
        %295 = vmatpush1.msra.mxu0 0.0
        %296 = vmatprep.subr.mxu0 0.0
        %297 = vmatpush1.msra.mxu0 0.0
        %298 = vmatprep.subr.mxu0 0.0
        %299 = vmatpush1.msra.mxu0 0.0
        %300 = vmatprep.subr.mxu0 0.0
        %301 = vmatpush1.msra.mxu0 0.0
        %302 = vmatprep.subr.mxu0 0.0
        %303 = vmatpush1.msra.mxu0 0.0
        %304 = vmatprep.subr.mxu0 0.0
        %305 = vmatpush1.msra.mxu0 0.0
        %306 = vmatprep.subr.mxu0 0.0
        %307 = vmatpush1.msra.mxu0 0.0
        %308 = vmatprep.subr.mxu0 0.0
        %309 = vmatpush1.msra.mxu0 0.0
        %310 = vmatprep.subr.mxu0 0.0
        %311 = vmatpush1.msra.mxu0 0.0
        %312 = vmatprep.subr.mxu0 0.0
        %313 = vmatpush1.msra.mxu0 0.0
        %314 = vmatprep.subr.mxu0 0.0
        %315 = vmatpush1.msra.mxu0 0.0
        %316 = vmatprep.subr.mxu0 0.0
        %317 = vmatpush1.msra.mxu0 0.0
        %318 = vmatprep.subr.mxu0 0.0
        %319 = vmatpush1.msra.mxu0 0.0
        %320 = vmatprep.subr.mxu0 0.0
        %321 = vmatpush1.msra.mxu0 0.0
        %322 = vmatprep.subr.mxu0 0.0
        %323 = vmatpush1.msra.mxu0 0.0
        %324 = vmatprep.subr.mxu0 0.0
        %325 = vmatpush1.msra.mxu0 0.0
        %326 = vmatprep.subr.mxu0 0.0
        %327 = vmatpush1.msra.mxu0 0.0
        %328 = vmatprep.subr.mxu0 0.0
        %329 = vmatpush1.msra.mxu0 0.0
        %330 = vmatprep.subr.mxu0 0.0
        %331 = vmatpush1.msra.mxu0 0.0
        %332 = vmatprep.mubr.f32.mxu0 0.0
        %333 = vmatmul.mubr.f32.gmra.mrb[0].mxu0 %v266
        %v334 = vpop.f32.mrb[0].mxu0
        %v335 = vadd.f32 0.0, %v334
        %v336 = vpop.f32.mrb[0].mxu0
        %337 = vdwg.mxu0
        %v338 = vadd.f32 %v263, %v335
        %v339 = vxor.u32 %v338, 2147483648
        %v340 = vmul.f32 %v339, 1.442695
        %v341 = vpow.pop %v340
        %v342 = vadd.f32 %v341, 1.0
        %v343 = vrcp.pop %v342
        %v344 = vmul.f32 1.0, %v343
        %v345 = vtanh.pop %v338
        %347 = vrot.lane.b32.xlu0 %v262, 32
        %v348 = vpop.permute.xlu0 %347
        %v350 = vmul.f32 %v344, %v348
        %352 = vrot.lane.b32.xlu0 %v345, 32
        %v353 = vpop.permute.xlu0 %352
        %v355 = vmul.f32 %v344, %v353
        %357 = vrot.lane.b32.xlu0 %v355, 32
        %v358 = vpop.permute.xlu0 %357
        %v360 = vadd.f32 %v350, %v358
        %v361 = vtanh.pop %v360
        %363 = vrot.lane.b32.xlu0 %v361, 32
        %v364 = vpop.permute.xlu0 %363
        %v366 = vmul.f32 %v344, %v364
        %368 = vrot.lane.b32.xlu0 %v366, 64
        %v369 = vpop.permute.xlu0 %368
        %vm371 = vcmask 254976
        %372 = vst.msk [vmem:[%s236] sm:$0x3] %vm371, %v369
        %s373 = scalar_lea.vmem %s245, 2
        %v374 = vld [vmem:[%s373] sm:$0x3]
        %v375 = vsel %vm264, %v369, 0
        %377 = vmatprep.subr.mxu0 0.0
        %378 = vmatpush1.msra.mxu0 %v257
        %379 = vmatprep.subr.mxu0 0.0
        %380 = vmatpush1.msra.mxu0 %v258
        %381 = vmatprep.subr.mxu0 0.0
        %382 = vmatpush1.msra.mxu0 %v259
        %383 = vmatprep.subr.mxu0 0.0
        %384 = vmatpush1.msra.mxu0 %v260
        %385 = vmatprep.subr.mxu0 0.0
        %386 = vmatpush1.msra.mxu0 0.0
        %387 = vmatprep.subr.mxu0 0.0
        %388 = vmatpush1.msra.mxu0 0.0
        %389 = vmatprep.subr.mxu0 0.0
        %390 = vmatpush1.msra.mxu0 0.0
        %391 = vmatprep.subr.mxu0 0.0
        %392 = vmatpush1.msra.mxu0 0.0
        %393 = vmatprep.subr.mxu0 0.0
        %394 = vmatpush1.msra.mxu0 0.0
        %395 = vmatprep.subr.mxu0 0.0
        %396 = vmatpush1.msra.mxu0 0.0
        %397 = vmatprep.subr.mxu0 0.0
        %398 = vmatpush1.msra.mxu0 0.0
        %399 = vmatprep.subr.mxu0 0.0
        %400 = vmatpush1.msra.mxu0 0.0
        %401 = vmatprep.subr.mxu0 0.0
        %402 = vmatpush1.msra.mxu0 0.0
        %403 = vmatprep.subr.mxu0 0.0
        %404 = vmatpush1.msra.mxu0 0.0
        %405 = vmatprep.subr.mxu0 0.0
        %406 = vmatpush1.msra.mxu0 0.0
        %407 = vmatprep.subr.mxu0 0.0
        %408 = vmatpush1.msra.mxu0 0.0
        %409 = vmatprep.subr.mxu0 0.0
        %410 = vmatpush1.msra.mxu0 0.0
        %411 = vmatprep.subr.mxu0 0.0
        %412 = vmatpush1.msra.mxu0 0.0
        %413 = vmatprep.subr.mxu0 0.0
        %414 = vmatpush1.msra.mxu0 0.0
        %415 = vmatprep.subr.mxu0 0.0
        %416 = vmatpush1.msra.mxu0 0.0
        %417 = vmatprep.subr.mxu0 0.0
        %418 = vmatpush1.msra.mxu0 0.0
        %419 = vmatprep.subr.mxu0 0.0
        %420 = vmatpush1.msra.mxu0 0.0
        %421 = vmatprep.subr.mxu0 0.0
        %422 = vmatpush1.msra.mxu0 0.0
        %423 = vmatprep.subr.mxu0 0.0
        %424 = vmatpush1.msra.mxu0 0.0
        %425 = vmatprep.subr.mxu0 0.0
        %426 = vmatpush1.msra.mxu0 0.0
        %427 = vmatprep.subr.mxu0 0.0
        %428 = vmatpush1.msra.mxu0 0.0
        %429 = vmatprep.subr.mxu0 0.0
        %430 = vmatpush1.msra.mxu0 0.0
        %431 = vmatprep.subr.mxu0 0.0
        %432 = vmatpush1.msra.mxu0 0.0
        %433 = vmatprep.subr.mxu0 0.0
        %434 = vmatpush1.msra.mxu0 0.0
        %435 = vmatprep.subr.mxu0 0.0
        %436 = vmatpush1.msra.mxu0 0.0
        %437 = vmatprep.subr.mxu0 0.0
        %438 = vmatpush1.msra.mxu0 0.0
        %439 = vmatprep.subr.mxu0 0.0
        %440 = vmatpush1.msra.mxu0 0.0
        %441 = vmatprep.mubr.f32.mxu0 0.0
        %442 = vmatmul.mubr.f32.gmra.mrb[0].mxu0 %v375
        %v443 = vpop.f32.mrb[0].mxu0
        %v444 = vadd.f32 0.0, %v443
        %v445 = vpop.f32.mrb[0].mxu0
        %446 = vdwg.mxu0
        %v447 = vadd.f32 %v374, %v444
        %v448 = vxor.u32 %v447, 2147483648
        %v449 = vmul.f32 %v448, 1.442695
        %v450 = vpow.pop %v449
        %v451 = vadd.f32 %v450, 1.0
        %v452 = vrcp.pop %v451
        %v453 = vmul.f32 1.0, %v452
        %v454 = vtanh.pop %v447
        %v455 = vmul.f32 %v453, %v360
        %457 = vrot.lane.b32.xlu0 %v454, 32
        %v458 = vpop.permute.xlu0 %457
        %v460 = vmul.f32 %v453, %v458
        %462 = vrot.lane.b32.xlu0 %v460, 32
        %v463 = vpop.permute.xlu0 %462
        %v465 = vadd.f32 %v455, %v463
        %v466 = vtanh.pop %v465
        %468 = vrot.lane.b32.xlu0 %v466, 32
        %v469 = vpop.permute.xlu0 %468
        %v471 = vmul.f32 %v453, %v469
        %473 = vrot.lane.b32.xlu0 %v471, 64
        %v474 = vpop.permute.xlu0 %473
        %s476 = scalar_lea.vmem %s236, 2 [#allocation4]
        %477 = vst.msk [vmem:[%s476] sm:$0x3] %vm371, %v474
        %s478 = scalar_lea.vmem %s245, 4
        %v479 = vld [vmem:[%s478] sm:$0x3]
        %v480 = vsel %vm264, %v474, 0
        %482 = vmatprep.subr.mxu0 0.0
        %483 = vmatpush1.msra.mxu0 %v257
        %484 = vmatprep.subr.mxu0 0.0
        %485 = vmatpush1.msra.mxu0 %v258
        %486 = vmatprep.subr.mxu0 0.0
        %487 = vmatpush1.msra.mxu0 %v259
        %488 = vmatprep.subr.mxu0 0.0
        %489 = vmatpush1.msra.mxu0 %v260
        %490 = vmatprep.subr.mxu0 0.0
        %491 = vmatpush1.msra.mxu0 0.0
        %492 = vmatprep.subr.mxu0 0.0
        %493 = vmatpush1.msra.mxu0 0.0
        %494 = vmatprep.subr.mxu0 0.0
        %495 = vmatpush1.msra.mxu0 0.0
        %496 = vmatprep.subr.mxu0 0.0
        %497 = vmatpush1.msra.mxu0 0.0
        %498 = vmatprep.subr.mxu0 0.0
        %499 = vmatpush1.msra.mxu0 0.0
        %500 = vmatprep.subr.mxu0 0.0
        %501 = vmatpush1.msra.mxu0 0.0
        %502 = vmatprep.subr.mxu0 0.0
        %503 = vmatpush1.msra.mxu0 0.0
        %504 = vmatprep.subr.mxu0 0.0
        %505 = vmatpush1.msra.mxu0 0.0
        %506 = vmatprep.subr.mxu0 0.0
        %507 = vmatpush1.msra.mxu0 0.0
        %508 = vmatprep.subr.mxu0 0.0
        %509 = vmatpush1.msra.mxu0 0.0
        %510 = vmatprep.subr.mxu0 0.0
        %511 = vmatpush1.msra.mxu0 0.0
        %512 = vmatprep.subr.mxu0 0.0
        %513 = vmatpush1.msra.mxu0 0.0
        %514 = vmatprep.subr.mxu0 0.0
        %515 = vmatpush1.msra.mxu0 0.0
        %516 = vmatprep.subr.mxu0 0.0
        %517 = vmatpush1.msra.mxu0 0.0
        %518 = vmatprep.subr.mxu0 0.0
        %519 = vmatpush1.msra.mxu0 0.0
        %520 = vmatprep.subr.mxu0 0.0
        %521 = vmatpush1.msra.mxu0 0.0
        %522 = vmatprep.subr.mxu0 0.0
        %523 = vmatpush1.msra.mxu0 0.0
        %524 = vmatprep.subr.mxu0 0.0
        %525 = vmatpush1.msra.mxu0 0.0
        %526 = vmatprep.subr.mxu0 0.0
        %527 = vmatpush1.msra.mxu0 0.0
        %528 = vmatprep.subr.mxu0 0.0
        %529 = vmatpush1.msra.mxu0 0.0
        %530 = vmatprep.subr.mxu0 0.0
        %531 = vmatpush1.msra.mxu0 0.0
        %532 = vmatprep.subr.mxu0 0.0
        %533 = vmatpush1.msra.mxu0 0.0
        %534 = vmatprep.subr.mxu0 0.0
        %535 = vmatpush1.msra.mxu0 0.0
        %536 = vmatprep.subr.mxu0 0.0
        %537 = vmatpush1.msra.mxu0 0.0
        %538 = vmatprep.subr.mxu0 0.0
        %539 = vmatpush1.msra.mxu0 0.0
        %540 = vmatprep.subr.mxu0 0.0
        %541 = vmatpush1.msra.mxu0 0.0
        %542 = vmatprep.subr.mxu0 0.0
        %543 = vmatpush1.msra.mxu0 0.0
        %544 = vmatprep.subr.mxu0 0.0
        %545 = vmatpush1.msra.mxu0 0.0
        %546 = vmatprep.mubr.f32.mxu0 0.0
        %547 = vmatmul.mubr.f32.gmra.mrb[0].mxu0 %v480
        %v548 = vpop.f32.mrb[0].mxu0
        %v549 = vadd.f32 0.0, %v548
        %v550 = vpop.f32.mrb[0].mxu0
        %551 = vdwg.mxu0
        %v552 = vadd.f32 %v479, %v549
        %v553 = vxor.u32 %v552, 2147483648
        %v554 = vmul.f32 %v553, 1.442695
        %v555 = vpow.pop %v554
        %v556 = vadd.f32 %v555, 1.0
        %v557 = vrcp.pop %v556
        %v558 = vmul.f32 1.0, %v557
        %v559 = vtanh.pop %v552
        %v560 = vmul.f32 %v558, %v465
        %562 = vrot.lane.b32.xlu0 %v559, 32
        %v563 = vpop.permute.xlu0 %562
        %v565 = vmul.f32 %v558, %v563
        %567 = vrot.lane.b32.xlu0 %v565, 32
        %v568 = vpop.permute.xlu0 %567
        %v570 = vadd.f32 %v560, %v568
        %v571 = vtanh.pop %v570
        %573 = vrot.lane.b32.xlu0 %v571, 32
        %v574 = vpop.permute.xlu0 %573
        %v576 = vmul.f32 %v558, %v574
        %578 = vrot.lane.b32.xlu0 %v576, 64
        %v579 = vpop.permute.xlu0 %578
        %s581 = scalar_lea.vmem %s236, 4 [#allocation4]
        %582 = vst.msk [vmem:[%s581] sm:$0x3] %vm371, %v579
        %s583 = scalar_lea.vmem %s245, 6
        %v584 = vld [vmem:[%s583] sm:$0x3]
        %v585 = vsel %vm264, %v579, 0
        %587 = vmatprep.subr.mxu0 0.0
        %588 = vmatpush1.msra.mxu0 %v257
        %589 = vmatprep.subr.mxu0 0.0
        %590 = vmatpush1.msra.mxu0 %v258
        %591 = vmatprep.subr.mxu0 0.0
        %592 = vmatpush1.msra.mxu0 %v259
        %593 = vmatprep.subr.mxu0 0.0
        %594 = vmatpush1.msra.mxu0 %v260
        %595 = vmatprep.subr.mxu0 0.0
        %596 = vmatpush1.msra.mxu0 0.0
        %597 = vmatprep.subr.mxu0 0.0
        %598 = vmatpush1.msra.mxu0 0.0
        %599 = vmatprep.subr.mxu0 0.0
        %600 = vmatpush1.msra.mxu0 0.0
        %601 = vmatprep.subr.mxu0 0.0
        %602 = vmatpush1.msra.mxu0 0.0
        %603 = vmatprep.subr.mxu0 0.0
        %604 = vmatpush1.msra.mxu0 0.0
        %605 = vmatprep.subr.mxu0 0.0
        %606 = vmatpush1.msra.mxu0 0.0
        %607 = vmatprep.subr.mxu0 0.0
        %608 = vmatpush1.msra.mxu0 0.0
        %609 = vmatprep.subr.mxu0 0.0
        %610 = vmatpush1.msra.mxu0 0.0
        %611 = vmatprep.subr.mxu0 0.0
        %612 = vmatpush1.msra.mxu0 0.0
        %613 = vmatprep.subr.mxu0 0.0
        %614 = vmatpush1.msra.mxu0 0.0
        %615 = vmatprep.subr.mxu0 0.0
        %616 = vmatpush1.msra.mxu0 0.0
        %617 = vmatprep.subr.mxu0 0.0
        %618 = vmatpush1.msra.mxu0 0.0
        %619 = vmatprep.subr.mxu0 0.0
        %620 = vmatpush1.msra.mxu0 0.0
        %621 = vmatprep.subr.mxu0 0.0
        %622 = vmatpush1.msra.mxu0 0.0
        %623 = vmatprep.subr.mxu0 0.0
        %624 = vmatpush1.msra.mxu0 0.0
        %625 = vmatprep.subr.mxu0 0.0
        %626 = vmatpush1.msra.mxu0 0.0
        %627 = vmatprep.subr.mxu0 0.0
        %628 = vmatpush1.msra.mxu0 0.0
        %629 = vmatprep.subr.mxu0 0.0
        %630 = vmatpush1.msra.mxu0 0.0
        %631 = vmatprep.subr.mxu0 0.0
        %632 = vmatpush1.msra.mxu0 0.0
        %633 = vmatprep.subr.mxu0 0.0
        %634 = vmatpush1.msra.mxu0 0.0
        %635 = vmatprep.subr.mxu0 0.0
        %636 = vmatpush1.msra.mxu0 0.0
        %637 = vmatprep.subr.mxu0 0.0
        %638 = vmatpush1.msra.mxu0 0.0
        %639 = vmatprep.subr.mxu0 0.0
        %640 = vmatpush1.msra.mxu0 0.0
        %641 = vmatprep.subr.mxu0 0.0
        %642 = vmatpush1.msra.mxu0 0.0
        %643 = vmatprep.subr.mxu0 0.0
        %644 = vmatpush1.msra.mxu0 0.0
        %645 = vmatprep.subr.mxu0 0.0
        %646 = vmatpush1.msra.mxu0 0.0
        %647 = vmatprep.subr.mxu0 0.0
        %648 = vmatpush1.msra.mxu0 0.0
        %649 = vmatprep.subr.mxu0 0.0
        %650 = vmatpush1.msra.mxu0 0.0
        %651 = vmatprep.mubr.f32.mxu0 0.0
        %652 = vmatmul.mubr.f32.gmra.mrb[0].mxu0 %v585
        %v653 = vpop.f32.mrb[0].mxu0
        %v654 = vadd.f32 0.0, %v653
        %v655 = vpop.f32.mrb[0].mxu0
        %656 = vdwg.mxu0
        %v657 = vadd.f32 %v584, %v654
        %v658 = vxor.u32 %v657, 2147483648
        %v659 = vmul.f32 %v658, 1.442695
        %v660 = vpow.pop %v659
        %v661 = vadd.f32 %v660, 1.0
        %v662 = vrcp.pop %v661
        %v663 = vmul.f32 1.0, %v662
        %v664 = vtanh.pop %v657
        %v665 = vmul.f32 %v663, %v570
        %667 = vrot.lane.b32.xlu0 %v664, 32
        %v668 = vpop.permute.xlu0 %667
        %v670 = vmul.f32 %v663, %v668
        %672 = vrot.lane.b32.xlu0 %v670, 32
        %v673 = vpop.permute.xlu0 %672
        %v675 = vadd.f32 %v665, %v673
        %v676 = vtanh.pop %v675
        %678 = vrot.lane.b32.xlu0 %v676, 32
        %v679 = vpop.permute.xlu0 %678
        %v681 = vmul.f32 %v663, %v679
        %683 = vrot.lane.b32.xlu0 %v681, 64
        %v684 = vpop.permute.xlu0 %683
        %s686 = scalar_lea.vmem %s236, 6 [#allocation4]
        %687 = vst.msk [vmem:[%s686] sm:$0x3] %vm371, %v684
        %688 = vst.msk [vmem:[#allocation2] sm:$0x3] %vm371, %v684
        %690 = vrot.lane.b32.xlu0 %v675, 96
        %v691 = vpop.permute.xlu0 %690
        %693 = vst.msk [vmem:[#allocation3] sm:$0x3] %vm371, %v691
        %p694 = scmp.eq.s32.totalorder %s21, 1
        // Predicated region
        $region41: #{encoder_forward.3} parent=35 // pred_check
          %p695 = pneg %p694
        $region42: #{encoder_forward.3} parent=35 // pred_check_branch
          %697 = sbr.rel (%p695) target = $region44
        $region43: #{encoder_forward.3} parent=35 // pred_region
          %698 = vst.msk [vmem:[%s5] sm:$0x3] %vm371, %v684
          %699 = vst.msk [vmem:[%s6] sm:$0x3] %vm371, %v691
        $region44: #{encoder_forward.3} parent=35 // pred_fallthru
          _
        %s700 = sand.u32 %s118, 1
        %s701 = scalar_lea.sflag [#allocation5], %s700
        %s702 = sand.u32 %s118, 1
        %s703 = smul.addr %s702, 8
        %s704 = scalar_lea.vmem [#allocation4], %s703
        // Predicated region
        $region45: #{encoder_forward.3} parent=35 // pred_check
          %p705 = pneg %p128
        $region46: #{encoder_forward.3} parent=35 // pred_check_branch
          %707 = sbr.rel (%p705) target = $region48
        $region47: #{encoder_forward.3} parent=35 // pred_region
          %s708 = smul.u32 4, %s21
          %s710 = ssub.s32 128, 128
          %711 = vsyncadd %s701, %s710
          %s712 = smul.addr %s708, 32
          %s713 = scalar_lea.hbm %s4, %s712
          %s714 = sshll.u32 %s704, 4
          %s715 = int_to_ptr.vmem [resolvable:$true] %s714
          %720 = dma.vmem_to_hbm [thread:$0]  %s715, 128, %s713, %s701, 32, 32, 2
        $region48: #{encoder_forward.3} parent=35 // pred_fallthru
          _
        // Predicated region
        $region49: #{encoder_forward.3} parent=35 // pred_check
          %p721 = pneg %p149
        $region50: #{encoder_forward.3} parent=35 // pred_check_branch
          %723 = sbr.rel (%p721) target = $region52
        $region51: #{encoder_forward.3} parent=35 // pred_region
          _
        $region52: #{encoder_forward.3} parent=35 // pred_fallthru
          _
        // Predicated region
        $region53: #{encoder_forward.3} parent=35 // pred_check
          %p724 = pneg %p170
        $region54: #{encoder_forward.3} parent=35 // pred_check_branch
          %726 = sbr.rel (%p724) target = $region56
        $region55: #{encoder_forward.3} parent=35 // pred_region
          _
        $region56: #{encoder_forward.3} parent=35 // pred_fallthru
          _
        // Predicated region
        $region57: #{encoder_forward.3} parent=35 // pred_check
          %p727 = pneg %p149
        $region58: #{encoder_forward.3} parent=35 // pred_check_branch
          %729 = sbr.rel (%p727) target = $region60
        $region59: #{encoder_forward.3} parent=35 // pred_region
          _
        $region60: #{encoder_forward.3} parent=35 // pred_fallthru
          _
        // Predicated region
        $region61: #{encoder_forward.3} parent=35 // pred_check
          %p730 = pneg %p170
        $region62: #{encoder_forward.3} parent=35 // pred_check_branch
          %732 = sbr.rel (%p730) target = $region64
        $region63: #{encoder_forward.3} parent=35 // pred_region
          _
        $region64: #{encoder_forward.3} parent=35 // pred_fallthru
          _
      $region36: #{encoder_forward.3} parent=5 // pred_fallthru
        _
      %p733 = scmp.le.s32.totalorder 2, %s16
      // Predicated region
      $region65: #{encoder_forward.3} parent=5 // pred_check
        %p734 = pneg %p733
      $region66: #{encoder_forward.3} parent=5 // pred_check_branch
        %736 = sbr.rel (%p734) target = $region68
      $region67: #{encoder_forward.3} parent=5 // pred_region
        %s737 = ssub.s32 %s16, 2
        // Predicated region
        $region69: #{encoder_forward.3} parent=67 // pred_check
          %p738 = pneg %p134
        $region70: #{encoder_forward.3} parent=67 // pred_check_branch
          %740 = sbr.rel (%p738) target = $region72
        $region71: #{encoder_forward.3} parent=67 // pred_region
          %s741 = sand.u32 %s119, 1
          %s742 = scalar_lea.sflag [#allocation5], %s741
          %s743 = sand.u32 %s119, 1
          %s744 = smul.addr %s743, 8
          %s745 = scalar_lea.vmem [#allocation4], %s744
          %746 = dma.done %s742, 128
        $region72: #{encoder_forward.3} parent=67 // pred_fallthru
          _
      $region68: #{encoder_forward.3} parent=5 // pred_fallthru
        _
    $region6: #{encoder_forward.3} parent=1 // loop_footer
      %s20 = sadd.s32 1, %s16
    $region7: #{encoder_forward.3} parent=1 // loop_footer_branch
      %15 = sbr.rel target = $region3
    $region8: #{encoder_forward.3} parent=1 // loop_exit
      _
    %747 = vsyncpa [#allocation5], 1
    %s748 = scalar_lea.sflag [#allocation5], 1
    %749 = vsyncpa %s748, 1

// kernel: encoder_forward.2
$region0: #{encoder_forward.2}
  #allocation0 [shape = 'u32[]', space=smem, size = 0x4, offset = 0x4, fixed_abs, tag = 'smem constant byte address 0x4 - core index']
  #allocation1 [shape = 'u32[144,128]{1,0:T(1,128)}', space=vmem, size = 0x12000, scoped, tag = 'internal scratch']
  #allocation2 [shape = 'f32[2,32]{1,0:T(2,128)}', space=vmem, size = 0x400, scoped, tag = 'scratch operand']
  #allocation3 [shape = 'f32[2,32]{1,0:T(2,128)}', space=vmem, size = 0x400, scoped, tag = 'scratch operand']
  %s0 = inlined_call_operand.vmem [shape: f32[8,2,128], index: 0, kind: input, shape index: {}]
  %s1 = inlined_call_operand.vmem [shape: f32[2,32], index: 1, kind: input, shape index: {}]
  %s2 = inlined_call_operand.vmem [shape: f32[2,32], index: 2, kind: input, shape index: {}]
  %s3 = inlined_call_operand.vmem [shape: f32[32,128], index: 3, kind: input, shape index: {}]
  %s4 = inlined_call_operand.vmem [shape: f32[8,2,32], index: 4, kind: output, shape index: {0}]
  %s5 = inlined_call_operand.vmem [shape: f32[2,32], index: 5, kind: output, shape index: {1}]
  %s6 = inlined_call_operand.vmem [shape: f32[2,32], index: 6, kind: output, shape index: {2}]
  %7 = xla_tuple %s4, %s5, %s6
  %s8 = sld [smem:[#allocation0]]
  $region73: #{encoder_forward.2} parent=0
    _
  %s10 = ssub.s32 1, %s8
  %s11 = scalar_select 0, %s10, %s8
  loop: start=0, step=1, limit=4
  $region2: #{encoder_forward.2} parent=0 // loop_pre_header
    _
  $region3: #{encoder_forward.2} parent=0 // loop_header
    %s13 = sphi 0, %s17
    %p14 = scmp.ge.s32.totalorder %s13, 4
    %s23 = sphi 0, %s25
    %s26 = sphi 0, %s23
    %s27 = sphi 0, %s26
    %s43 = sphi 0, %s27
    %s47 = sphi 0, %s47
    %s49 = sphi 0, %s47
    %s50 = sphi 0, %s49
    %s64 = sphi 0, %s50
    %s68 = sphi 0, %s68
    %s70 = sphi 0, %s68
    %s71 = sphi 0, %s70
    %s85 = sphi 0, %s71
    %s89 = sphi 0, %s89
    %s91 = sphi 0, %s89
    %s92 = sphi 0, %s91
    %s106 = sphi 0, %s92
    %s112 = sphi 0, %s114
    %s115 = sphi 0, %s112
    %s116 = sphi 0, %s115
    %s132 = sphi 0, %s116
    %s136 = sphi 0, %s136
    %s138 = sphi 0, %s136
    %s139 = sphi 0, %s138
    %s153 = sphi 0, %s139
    %s157 = sphi 0, %s157
    %s159 = sphi 0, %s157
    %s160 = sphi 0, %s159
    %s174 = sphi 0, %s160
  $region4: #{encoder_forward.2} parent=0 // loop_header_branch
    %16 = sbr.rel (%p14) target = $region8
  $region5: #{encoder_forward.2} parent=0 // loop_body
    %s18 = ssub.s32 %s13, 1
    %s19 = ssub.s32 %s13, 2
    %s20 = sadd.s32 %s13, 1
    %s21 = ssub.s32 %s13, %s20
    %p22 = scmp.eq.s32.totalorder %s21, 0
    %s24 = sadd.s32 %s23, 1
    %s25 = scalar_select %p22, %s23, %s24
    %p28 = pneg %p22
    %p29 = scmp.eq.s32.totalorder %s13, 1
    %p30 = por %p28, %p29
    %p31 = scmp.ne.s32.totalorder %s23, %s26
    %p32 = scmp.eq.s32.totalorder %s13, 0
    %p33 = por %p31, %p32
    %p34 = scmp.ne.s32.totalorder %s23, %s26
    %p35 = scmp.eq.s32.totalorder %s18, 1
    %p36 = por %p34, %p35
    %p37 = scmp.ne.s32.totalorder %s26, %s27
    %p38 = scmp.eq.s32.totalorder %s18, 0
    %p39 = por %p37, %p38
    %p40 = scmp.ne.s32.totalorder %s26, %s27
    %p41 = scmp.eq.s32.totalorder %s19, 1
    %p42 = por %p40, %p41
    %p44 = scmp.ne.s32.totalorder %s27, %s43
    %p45 = scmp.eq.s32.totalorder %s19, 0
    %p46 = por %p44, %p45
    %s48 = sadd.s32 %s47, 1
    %p51 = scmp.eq.s32.totalorder %s13, 1
    %p52 = scmp.ne.s32.totalorder %s47, %s49
    %p53 = scmp.eq.s32.totalorder %s13, 0
    %p54 = por %p52, %p53
    %p55 = scmp.ne.s32.totalorder %s47, %s49
    %p56 = scmp.eq.s32.totalorder %s18, 1
    %p57 = por %p55, %p56
    %p58 = scmp.ne.s32.totalorder %s49, %s50
    %p59 = scmp.eq.s32.totalorder %s18, 0
    %p60 = por %p58, %p59
    %p61 = scmp.ne.s32.totalorder %s49, %s50
    %p62 = scmp.eq.s32.totalorder %s19, 1
    %p63 = por %p61, %p62
    %p65 = scmp.ne.s32.totalorder %s50, %s64
    %p66 = scmp.eq.s32.totalorder %s19, 0
    %p67 = por %p65, %p66
    %s69 = sadd.s32 %s68, 1
    %p72 = scmp.eq.s32.totalorder %s13, 1
    %p73 = scmp.ne.s32.totalorder %s68, %s70
    %p74 = scmp.eq.s32.totalorder %s13, 0
    %p75 = por %p73, %p74
    %p76 = scmp.ne.s32.totalorder %s68, %s70
    %p77 = scmp.eq.s32.totalorder %s18, 1
    %p78 = por %p76, %p77
    %p79 = scmp.ne.s32.totalorder %s70, %s71
    %p80 = scmp.eq.s32.totalorder %s18, 0
    %p81 = por %p79, %p80
    %p82 = scmp.ne.s32.totalorder %s70, %s71
    %p83 = scmp.eq.s32.totalorder %s19, 1
    %p84 = por %p82, %p83
    %p86 = scmp.ne.s32.totalorder %s71, %s85
    %p87 = scmp.eq.s32.totalorder %s19, 0
    %p88 = por %p86, %p87
    %s90 = sadd.s32 %s89, 1
    %p93 = scmp.eq.s32.totalorder %s13, 1
    %p94 = scmp.ne.s32.totalorder %s89, %s91
    %p95 = scmp.eq.s32.totalorder %s13, 0
    %p96 = por %p94, %p95
    %p97 = scmp.ne.s32.totalorder %s89, %s91
    %p98 = scmp.eq.s32.totalorder %s18, 1
    %p99 = por %p97, %p98
    %p100 = scmp.ne.s32.totalorder %s91, %s92
    %p101 = scmp.eq.s32.totalorder %s18, 0
    %p102 = por %p100, %p101
    %p103 = scmp.ne.s32.totalorder %s91, %s92
    %p104 = scmp.eq.s32.totalorder %s19, 1
    %p105 = por %p103, %p104
    %p107 = scmp.ne.s32.totalorder %s92, %s106
    %p108 = scmp.eq.s32.totalorder %s19, 0
    %p109 = por %p107, %p108
    %s110 = ssub.s32 %s13, %s20
    %p111 = scmp.eq.s32.totalorder %s110, 0
    %s113 = sadd.s32 %s112, 1
    %s114 = scalar_select %p111, %s112, %s113
    %p117 = pneg %p111
    %p118 = scmp.eq.s32.totalorder %s13, 1
    %p119 = por %p117, %p118
    %p120 = scmp.ne.s32.totalorder %s112, %s115
    %p121 = scmp.eq.s32.totalorder %s13, 0
    %p122 = por %p120, %p121
    %p123 = scmp.ne.s32.totalorder %s112, %s115
    %p124 = scmp.eq.s32.totalorder %s18, 1
    %p125 = por %p123, %p124
    %p126 = scmp.ne.s32.totalorder %s115, %s116
    %p127 = scmp.eq.s32.totalorder %s18, 0
    %p128 = por %p126, %p127
    %p129 = scmp.ne.s32.totalorder %s115, %s116
    %p130 = scmp.eq.s32.totalorder %s19, 1
    %p131 = por %p129, %p130
    %p133 = scmp.ne.s32.totalorder %s116, %s132
    %p134 = scmp.eq.s32.totalorder %s19, 0
    %p135 = por %p133, %p134
    %s137 = sadd.s32 %s136, 1
    %p140 = scmp.eq.s32.totalorder %s13, 1
    %p141 = scmp.ne.s32.totalorder %s136, %s138
    %p142 = scmp.eq.s32.totalorder %s13, 0
    %p143 = por %p141, %p142
    %p144 = scmp.ne.s32.totalorder %s136, %s138
    %p145 = scmp.eq.s32.totalorder %s18, 1
    %p146 = por %p144, %p145
    %p147 = scmp.ne.s32.totalorder %s138, %s139
    %p148 = scmp.eq.s32.totalorder %s18, 0
    %p149 = por %p147, %p148
    %p150 = scmp.ne.s32.totalorder %s138, %s139
    %p151 = scmp.eq.s32.totalorder %s19, 1
    %p152 = por %p150, %p151
    %p154 = scmp.ne.s32.totalorder %s139, %s153
    %p155 = scmp.eq.s32.totalorder %s19, 0
    %p156 = por %p154, %p155
    %s158 = sadd.s32 %s157, 1
    %p161 = scmp.eq.s32.totalorder %s13, 1
    %p162 = scmp.ne.s32.totalorder %s157, %s159
    %p163 = scmp.eq.s32.totalorder %s13, 0
    %p164 = por %p162, %p163
    %p165 = scmp.ne.s32.totalorder %s157, %s159
    %p166 = scmp.eq.s32.totalorder %s18, 1
    %p167 = por %p165, %p166
    %p168 = scmp.ne.s32.totalorder %s159, %s160
    %p169 = scmp.eq.s32.totalorder %s18, 0
    %p170 = por %p168, %p169
    %p171 = scmp.ne.s32.totalorder %s159, %s160
    %p172 = scmp.eq.s32.totalorder %s19, 1
    %p173 = por %p171, %p172
    %p175 = scmp.ne.s32.totalorder %s160, %s174
    %p176 = scmp.eq.s32.totalorder %s19, 0
    %p177 = por %p175, %p176
    %p178 = scmp.le.s32.totalorder 1, %s13
    %p179 = scmp.lt.s32.totalorder %s13, 3
    %p180 = pnand %p178, %p179
    %p181 = pneg %p180
    // Predicated region
    $region9: #{encoder_forward.2} parent=5 // pred_check
      _
    $region10: #{encoder_forward.2} parent=5 // pred_check_branch
      %183 = sbr.rel (%p180) target = $region12
    $region11: #{encoder_forward.2} parent=5 // pred_region
      %s184 = ssub.s32 %s13, 1
      // Predicated region
      $region13: #{encoder_forward.2} parent=11 // pred_check
        %p185 = pneg %p60
      $region14: #{encoder_forward.2} parent=11 // pred_check_branch
        %187 = sbr.rel (%p185) target = $region16
      $region15: #{encoder_forward.2} parent=11 // pred_region
        _
      $region16: #{encoder_forward.2} parent=11 // pred_fallthru
        _
      // Predicated region
      $region17: #{encoder_forward.2} parent=11 // pred_check
        %p188 = pneg %p81
      $region18: #{encoder_forward.2} parent=11 // pred_check_branch
        %190 = sbr.rel (%p188) target = $region20
      $region19: #{encoder_forward.2} parent=11 // pred_region
        _
      $region20: #{encoder_forward.2} parent=11 // pred_fallthru
        _
      // Predicated region
      $region21: #{encoder_forward.2} parent=11 // pred_check
        %p191 = pneg %p102
      $region22: #{encoder_forward.2} parent=11 // pred_check_branch
        %193 = sbr.rel (%p191) target = $region24
      $region23: #{encoder_forward.2} parent=11 // pred_region
        _
      $region24: #{encoder_forward.2} parent=11 // pred_fallthru
        _
    $region12: #{encoder_forward.2} parent=5 // pred_fallthru
      _
    %p194 = scmp.lt.s32.totalorder %s13, 2
    // Predicated region
    $region25: #{encoder_forward.2} parent=5 // pred_check
      %p195 = pneg %p194
    $region26: #{encoder_forward.2} parent=5 // pred_check_branch
      %197 = sbr.rel (%p195) target = $region28
    $region27: #{encoder_forward.2} parent=5 // pred_region
      // Predicated region
      $region29: #{encoder_forward.2} parent=27 // pred_check
        %p198 = pneg %p33
      $region30: #{encoder_forward.2} parent=27 // pred_check_branch
        %200 = sbr.rel (%p198) target = $region32
      $region31: #{encoder_forward.2} parent=27 // pred_region
        %s201 = smul.u32 4, %s13
        %p202 = scmp.lt.s32.totalorder %s201, 7
        %s203 = scalar_select %p202, %s201, 7
        %s204 = smul.addr %s203, 2
        %s205 = scalar_lea.vmem %s0, %s204
        %s206 = smul.u32 4, %s13
      $region32: #{encoder_forward.2} parent=27 // pred_fallthru
        _
    $region28: #{encoder_forward.2} parent=5 // pred_fallthru
      _
    %p207 = scmp.le.s32.totalorder 1, %s13
    %p208 = scmp.lt.s32.totalorder %s13, 3
    %p209 = pnand %p207, %p208
    %p210 = pneg %p209
    // Predicated region
    $region33: #{encoder_forward.2} parent=5 // pred_check
      _
    $region34: #{encoder_forward.2} parent=5 // pred_check_branch
      %212 = sbr.rel (%p209) target = $region36
    $region35: #{encoder_forward.2} parent=5 // pred_region
      %s213 = ssub.s32 %s13, 1
      %s214 = smul.u32 4, %s18
      %p215 = scmp.lt.s32.totalorder %s214, 7
      %s216 = scalar_select %p215, %s214, 7
      %s217 = smul.addr %s216, 2
      %s218 = scalar_lea.vmem %s0, %s217
      %p219 = pneg %p39
      %p220 = pneg %p36
      %p221 = pneg %p60
      %p222 = pneg %p57
      %p223 = pneg %p81
      %p224 = pneg %p78
      %p225 = pneg %p102
      %p226 = pneg %p99
      %p227 = pneg %p128
      %p228 = pneg %p125
      %s229 = smul.u32 4, %s18
      %p230 = scmp.lt.s32.totalorder %s229, 7
      %s231 = scalar_select %p230, %s229, 7
      %s232 = smul.addr %s231, 2
      %s233 = scalar_lea.vmem %s4, %s232
      %p234 = pneg %p149
      %p235 = pneg %p146
      %p236 = pneg %p170
      %p237 = pneg %p167
      %s238 = smul.u32 4, %s18
      %p239 = scmp.lt.s32.totalorder %s238, 7
      %s240 = scalar_select %p239, %s238, 7
      %s241 = smul.addr %s240, 2
      %s242 = scalar_lea.vmem %s0, %s241
      %s243 = smul.u32 4, %s18
      %s244 = smul.u32 4, %s18
      %p245 = scmp.lt.s32.totalorder %s244, 7
      %s246 = scalar_select %p245, %s244, 7
      %s247 = smul.addr %s246, 2
      %s248 = scalar_lea.vmem %s4, %s247
      %s249 = smul.u32 4, %s18
      %p250 = scmp.eq.s32.totalorder %s18, 0
      // Predicated region
      $region37: #{encoder_forward.2} parent=35 // pred_check
        %p251 = pneg %p250
      $region38: #{encoder_forward.2} parent=35 // pred_check_branch
        %253 = sbr.rel (%p251) target = $region40
      $region39: #{encoder_forward.2} parent=35 // pred_region
        %v254 = vld [vmem:[%s1] sm:$0x3]
        %vm255 = vcmask 254976
        %256 = vst.msk [vmem:[#allocation2] sm:$0x3] %vm255, %v254
        %v257 = vld [vmem:[%s2] sm:$0x3]
        %258 = vst.msk [vmem:[#allocation3] sm:$0x3] %vm255, %v257
      $region40: #{encoder_forward.2} parent=35 // pred_fallthru
        _
      %v259 = vld [vmem:[%s3] sm:$0xff]
      %v260 = vld [vmem:[%s3 + $0x8] sm:$0xff]
      %v261 = vld [vmem:[%s3 + $0x10] sm:$0xff]
      %v262 = vld [vmem:[%s3 + $0x18] sm:$0xff]
      %v263 = vld [vmem:[#allocation2] sm:$0x3]
      %v264 = vld [vmem:[#allocation3] sm:$0x3]
      %v265 = vld [vmem:[%s242] sm:$0x3]
      %vm266 = vcmask 261120
      %v268 = vsel %vm266, %v263, 0
      %270 = vmatprep.subr.mxu0 0.0
      %271 = vmatpush1.msra.mxu0 %v259
      %272 = vmatprep.subr.mxu0 0.0
      %273 = vmatpush1.msra.mxu0 %v260
      %274 = vmatprep.subr.mxu0 0.0
      %275 = vmatpush1.msra.mxu0 %v261
      %276 = vmatprep.subr.mxu0 0.0
      %277 = vmatpush1.msra.mxu0 %v262
      %278 = vmatprep.subr.mxu0 0.0
      %279 = vmatpush1.msra.mxu0 0.0
      %280 = vmatprep.subr.mxu0 0.0
      %281 = vmatpush1.msra.mxu0 0.0
      %282 = vmatprep.subr.mxu0 0.0
      %283 = vmatpush1.msra.mxu0 0.0
      %284 = vmatprep.subr.mxu0 0.0
      %285 = vmatpush1.msra.mxu0 0.0
      %286 = vmatprep.subr.mxu0 0.0
      %287 = vmatpush1.msra.mxu0 0.0
      %288 = vmatprep.subr.mxu0 0.0
      %289 = vmatpush1.msra.mxu0 0.0
      %290 = vmatprep.subr.mxu0 0.0
      %291 = vmatpush1.msra.mxu0 0.0
      %292 = vmatprep.subr.mxu0 0.0
      %293 = vmatpush1.msra.mxu0 0.0
      %294 = vmatprep.subr.mxu0 0.0
      %295 = vmatpush1.msra.mxu0 0.0
      %296 = vmatprep.subr.mxu0 0.0
      %297 = vmatpush1.msra.mxu0 0.0
      %298 = vmatprep.subr.mxu0 0.0
      %299 = vmatpush1.msra.mxu0 0.0
      %300 = vmatprep.subr.mxu0 0.0
      %301 = vmatpush1.msra.mxu0 0.0
      %302 = vmatprep.subr.mxu0 0.0
      %303 = vmatpush1.msra.mxu0 0.0
      %304 = vmatprep.subr.mxu0 0.0
      %305 = vmatpush1.msra.mxu0 0.0
      %306 = vmatprep.subr.mxu0 0.0
      %307 = vmatpush1.msra.mxu0 0.0
      %308 = vmatprep.subr.mxu0 0.0
      %309 = vmatpush1.msra.mxu0 0.0
      %310 = vmatprep.subr.mxu0 0.0
      %311 = vmatpush1.msra.mxu0 0.0
      %312 = vmatprep.subr.mxu0 0.0
      %313 = vmatpush1.msra.mxu0 0.0
      %314 = vmatprep.subr.mxu0 0.0
      %315 = vmatpush1.msra.mxu0 0.0
      %316 = vmatprep.subr.mxu0 0.0
      %317 = vmatpush1.msra.mxu0 0.0
      %318 = vmatprep.subr.mxu0 0.0
      %319 = vmatpush1.msra.mxu0 0.0
      %320 = vmatprep.subr.mxu0 0.0
      %321 = vmatpush1.msra.mxu0 0.0
      %322 = vmatprep.subr.mxu0 0.0
      %323 = vmatpush1.msra.mxu0 0.0
      %324 = vmatprep.subr.mxu0 0.0
      %325 = vmatpush1.msra.mxu0 0.0
      %326 = vmatprep.subr.mxu0 0.0
      %327 = vmatpush1.msra.mxu0 0.0
      %328 = vmatprep.subr.mxu0 0.0
      %329 = vmatpush1.msra.mxu0 0.0
      %330 = vmatprep.subr.mxu0 0.0
      %331 = vmatpush1.msra.mxu0 0.0
      %332 = vmatprep.subr.mxu0 0.0
      %333 = vmatpush1.msra.mxu0 0.0
      %334 = vmatprep.mubr.f32.mxu0 0.0
      %335 = vmatmul.mubr.f32.gmra.mrb[0].mxu0 %v268
      %v336 = vpop.f32.mrb[0].mxu0
      %v337 = vadd.f32 0.0, %v336
      %v338 = vpop.f32.mrb[0].mxu0
      %339 = vdwg.mxu0
      %v340 = vadd.f32 %v265, %v337
      %v341 = vxor.u32 %v340, 2147483648
      %v342 = vmul.f32 %v341, 1.442695
      %v343 = vpow.pop %v342
      %v344 = vadd.f32 %v343, 1.0
      %v345 = vrcp.pop %v344
      %v346 = vmul.f32 1.0, %v345
      %v347 = vtanh.pop %v340
      %349 = vrot.lane.b32.xlu0 %v264, 32
      %v350 = vpop.permute.xlu0 %349
      %v352 = vmul.f32 %v346, %v350
      %354 = vrot.lane.b32.xlu0 %v347, 32
      %v355 = vpop.permute.xlu0 %354
      %v357 = vmul.f32 %v346, %v355
      %359 = vrot.lane.b32.xlu0 %v357, 32
      %v360 = vpop.permute.xlu0 %359
      %v362 = vadd.f32 %v352, %v360
      %v363 = vtanh.pop %v362
      %365 = vrot.lane.b32.xlu0 %v363, 32
      %v366 = vpop.permute.xlu0 %365
      %v368 = vmul.f32 %v346, %v366
      %370 = vrot.lane.b32.xlu0 %v368, 64
      %v371 = vpop.permute.xlu0 %370
      %vm373 = vcmask 254976
      %374 = vst.msk [vmem:[%s248] sm:$0x3] %vm373, %v371
      %s375 = scalar_lea.vmem %s242, 2
      %v376 = vld [vmem:[%s375] sm:$0x3]
      %v377 = vsel %vm266, %v371, 0
      %379 = vmatprep.subr.mxu0 0.0
      %380 = vmatpush1.msra.mxu0 %v259
      %381 = vmatprep.subr.mxu0 0.0
      %382 = vmatpush1.msra.mxu0 %v260
      %383 = vmatprep.subr.mxu0 0.0
      %384 = vmatpush1.msra.mxu0 %v261
      %385 = vmatprep.subr.mxu0 0.0
      %386 = vmatpush1.msra.mxu0 %v262
      %387 = vmatprep.subr.mxu0 0.0
      %388 = vmatpush1.msra.mxu0 0.0
      %389 = vmatprep.subr.mxu0 0.0
      %390 = vmatpush1.msra.mxu0 0.0
      %391 = vmatprep.subr.mxu0 0.0
      %392 = vmatpush1.msra.mxu0 0.0
      %393 = vmatprep.subr.mxu0 0.0
      %394 = vmatpush1.msra.mxu0 0.0
      %395 = vmatprep.subr.mxu0 0.0
      %396 = vmatpush1.msra.mxu0 0.0
      %397 = vmatprep.subr.mxu0 0.0
      %398 = vmatpush1.msra.mxu0 0.0
      %399 = vmatprep.subr.mxu0 0.0
      %400 = vmatpush1.msra.mxu0 0.0
      %401 = vmatprep.subr.mxu0 0.0
      %402 = vmatpush1.msra.mxu0 0.0
      %403 = vmatprep.subr.mxu0 0.0
      %404 = vmatpush1.msra.mxu0 0.0
      %405 = vmatprep.subr.mxu0 0.0
      %406 = vmatpush1.msra.mxu0 0.0
      %407 = vmatprep.subr.mxu0 0.0
      %408 = vmatpush1.msra.mxu0 0.0
      %409 = vmatprep.subr.mxu0 0.0
      %410 = vmatpush1.msra.mxu0 0.0
      %411 = vmatprep.subr.mxu0 0.0
      %412 = vmatpush1.msra.mxu0 0.0
      %413 = vmatprep.subr.mxu0 0.0
      %414 = vmatpush1.msra.mxu0 0.0
      %415 = vmatprep.subr.mxu0 0.0
      %416 = vmatpush1.msra.mxu0 0.0
      %417 = vmatprep.subr.mxu0 0.0
      %418 = vmatpush1.msra.mxu0 0.0
      %419 = vmatprep.subr.mxu0 0.0
      %420 = vmatpush1.msra.mxu0 0.0
      %421 = vmatprep.subr.mxu0 0.0
      %422 = vmatpush1.msra.mxu0 0.0
      %423 = vmatprep.subr.mxu0 0.0
      %424 = vmatpush1.msra.mxu0 0.0
      %425 = vmatprep.subr.mxu0 0.0
      %426 = vmatpush1.msra.mxu0 0.0
      %427 = vmatprep.subr.mxu0 0.0
      %428 = vmatpush1.msra.mxu0 0.0
      %429 = vmatprep.subr.mxu0 0.0
      %430 = vmatpush1.msra.mxu0 0.0
      %431 = vmatprep.subr.mxu0 0.0
      %432 = vmatpush1.msra.mxu0 0.0
      %433 = vmatprep.subr.mxu0 0.0
      %434 = vmatpush1.msra.mxu0 0.0
      %435 = vmatprep.subr.mxu0 0.0
      %436 = vmatpush1.msra.mxu0 0.0
      %437 = vmatprep.subr.mxu0 0.0
      %438 = vmatpush1.msra.mxu0 0.0
      %439 = vmatprep.subr.mxu0 0.0
      %440 = vmatpush1.msra.mxu0 0.0
      %441 = vmatprep.subr.mxu0 0.0
      %442 = vmatpush1.msra.mxu0 0.0
      %443 = vmatprep.mubr.f32.mxu0 0.0
      %444 = vmatmul.mubr.f32.gmra.mrb[0].mxu0 %v377
      %v445 = vpop.f32.mrb[0].mxu0
      %v446 = vadd.f32 0.0, %v445
      %v447 = vpop.f32.mrb[0].mxu0
      %448 = vdwg.mxu0
      %v449 = vadd.f32 %v376, %v446
      %v450 = vxor.u32 %v449, 2147483648
      %v451 = vmul.f32 %v450, 1.442695
      %v452 = vpow.pop %v451
      %v453 = vadd.f32 %v452, 1.0
      %v454 = vrcp.pop %v453
      %v455 = vmul.f32 1.0, %v454
      %v456 = vtanh.pop %v449
      %v457 = vmul.f32 %v455, %v362
      %459 = vrot.lane.b32.xlu0 %v456, 32
      %v460 = vpop.permute.xlu0 %459
      %v462 = vmul.f32 %v455, %v460
      %464 = vrot.lane.b32.xlu0 %v462, 32
      %v465 = vpop.permute.xlu0 %464
      %v467 = vadd.f32 %v457, %v465
      %v468 = vtanh.pop %v467
      %470 = vrot.lane.b32.xlu0 %v468, 32
      %v471 = vpop.permute.xlu0 %470
      %v473 = vmul.f32 %v455, %v471
      %475 = vrot.lane.b32.xlu0 %v473, 64
      %v476 = vpop.permute.xlu0 %475
      %s478 = scalar_lea.vmem %s248, 2
      %479 = vst.msk [vmem:[%s478] sm:$0x3] %vm373, %v476
      %s480 = scalar_lea.vmem %s242, 4
      %v481 = vld [vmem:[%s480] sm:$0x3]
      %v482 = vsel %vm266, %v476, 0
      %484 = vmatprep.subr.mxu0 0.0
      %485 = vmatpush1.msra.mxu0 %v259
      %486 = vmatprep.subr.mxu0 0.0
      %487 = vmatpush1.msra.mxu0 %v260
      %488 = vmatprep.subr.mxu0 0.0
      %489 = vmatpush1.msra.mxu0 %v261
      %490 = vmatprep.subr.mxu0 0.0
      %491 = vmatpush1.msra.mxu0 %v262
      %492 = vmatprep.subr.mxu0 0.0
      %493 = vmatpush1.msra.mxu0 0.0
      %494 = vmatprep.subr.mxu0 0.0
      %495 = vmatpush1.msra.mxu0 0.0
      %496 = vmatprep.subr.mxu0 0.0
      %497 = vmatpush1.msra.mxu0 0.0
      %498 = vmatprep.subr.mxu0 0.0
      %499 = vmatpush1.msra.mxu0 0.0
      %500 = vmatprep.subr.mxu0 0.0
      %501 = vmatpush1.msra.mxu0 0.0
      %502 = vmatprep.subr.mxu0 0.0
      %503 = vmatpush1.msra.mxu0 0.0
      %504 = vmatprep.subr.mxu0 0.0
      %505 = vmatpush1.msra.mxu0 0.0
      %506 = vmatprep.subr.mxu0 0.0
      %507 = vmatpush1.msra.mxu0 0.0
      %508 = vmatprep.subr.mxu0 0.0
      %509 = vmatpush1.msra.mxu0 0.0
      %510 = vmatprep.subr.mxu0 0.0
      %511 = vmatpush1.msra.mxu0 0.0
      %512 = vmatprep.subr.mxu0 0.0
      %513 = vmatpush1.msra.mxu0 0.0
      %514 = vmatprep.subr.mxu0 0.0
      %515 = vmatpush1.msra.mxu0 0.0
      %516 = vmatprep.subr.mxu0 0.0
      %517 = vmatpush1.msra.mxu0 0.0
      %518 = vmatprep.subr.mxu0 0.0
      %519 = vmatpush1.msra.mxu0 0.0
      %520 = vmatprep.subr.mxu0 0.0
      %521 = vmatpush1.msra.mxu0 0.0
      %522 = vmatprep.subr.mxu0 0.0
      %523 = vmatpush1.msra.mxu0 0.0
      %524 = vmatprep.subr.mxu0 0.0
      %525 = vmatpush1.msra.mxu0 0.0
      %526 = vmatprep.subr.mxu0 0.0
      %527 = vmatpush1.msra.mxu0 0.0
      %528 = vmatprep.subr.mxu0 0.0
      %529 = vmatpush1.msra.mxu0 0.0
      %530 = vmatprep.subr.mxu0 0.0
      %531 = vmatpush1.msra.mxu0 0.0
      %532 = vmatprep.subr.mxu0 0.0
      %533 = vmatpush1.msra.mxu0 0.0
      %534 = vmatprep.subr.mxu0 0.0
      %535 = vmatpush1.msra.mxu0 0.0
      %536 = vmatprep.subr.mxu0 0.0
      %537 = vmatpush1.msra.mxu0 0.0
      %538 = vmatprep.subr.mxu0 0.0
      %539 = vmatpush1.msra.mxu0 0.0
      %540 = vmatprep.subr.mxu0 0.0
      %541 = vmatpush1.msra.mxu0 0.0
      %542 = vmatprep.subr.mxu0 0.0
      %543 = vmatpush1.msra.mxu0 0.0
      %544 = vmatprep.subr.mxu0 0.0
      %545 = vmatpush1.msra.mxu0 0.0
      %546 = vmatprep.subr.mxu0 0.0
      %547 = vmatpush1.msra.mxu0 0.0
      %548 = vmatprep.mubr.f32.mxu0 0.0
      %549 = vmatmul.mubr.f32.gmra.mrb[0].mxu0 %v482
      %v550 = vpop.f32.mrb[0].mxu0
      %v551 = vadd.f32 0.0, %v550
      %v552 = vpop.f32.mrb[0].mxu0
      %553 = vdwg.mxu0
      %v554 = vadd.f32 %v481, %v551
      %v555 = vxor.u32 %v554, 2147483648
      %v556 = vmul.f32 %v555, 1.442695
      %v557 = vpow.pop %v556
      %v558 = vadd.f32 %v557, 1.0
      %v559 = vrcp.pop %v558
      %v560 = vmul.f32 1.0, %v559
      %v561 = vtanh.pop %v554
      %v562 = vmul.f32 %v560, %v467
      %564 = vrot.lane.b32.xlu0 %v561, 32
      %v565 = vpop.permute.xlu0 %564
      %v567 = vmul.f32 %v560, %v565
      %569 = vrot.lane.b32.xlu0 %v567, 32
      %v570 = vpop.permute.xlu0 %569
      %v572 = vadd.f32 %v562, %v570
      %v573 = vtanh.pop %v572
      %575 = vrot.lane.b32.xlu0 %v573, 32
      %v576 = vpop.permute.xlu0 %575
      %v578 = vmul.f32 %v560, %v576
      %580 = vrot.lane.b32.xlu0 %v578, 64
      %v581 = vpop.permute.xlu0 %580
      %s583 = scalar_lea.vmem %s248, 4
      %584 = vst.msk [vmem:[%s583] sm:$0x3] %vm373, %v581
      %s585 = scalar_lea.vmem %s242, 6
      %v586 = vld [vmem:[%s585] sm:$0x3]
      %v587 = vsel %vm266, %v581, 0
      %589 = vmatprep.subr.mxu0 0.0
      %590 = vmatpush1.msra.mxu0 %v259
      %591 = vmatprep.subr.mxu0 0.0
      %592 = vmatpush1.msra.mxu0 %v260
      %593 = vmatprep.subr.mxu0 0.0
      %594 = vmatpush1.msra.mxu0 %v261
      %595 = vmatprep.subr.mxu0 0.0
      %596 = vmatpush1.msra.mxu0 %v262
      %597 = vmatprep.subr.mxu0 0.0
      %598 = vmatpush1.msra.mxu0 0.0
      %599 = vmatprep.subr.mxu0 0.0
      %600 = vmatpush1.msra.mxu0 0.0
      %601 = vmatprep.subr.mxu0 0.0
      %602 = vmatpush1.msra.mxu0 0.0
      %603 = vmatprep.subr.mxu0 0.0
      %604 = vmatpush1.msra.mxu0 0.0
      %605 = vmatprep.subr.mxu0 0.0
      %606 = vmatpush1.msra.mxu0 0.0
      %607 = vmatprep.subr.mxu0 0.0
      %608 = vmatpush1.msra.mxu0 0.0
      %609 = vmatprep.subr.mxu0 0.0
      %610 = vmatpush1.msra.mxu0 0.0
      %611 = vmatprep.subr.mxu0 0.0
      %612 = vmatpush1.msra.mxu0 0.0
      %613 = vmatprep.subr.mxu0 0.0
      %614 = vmatpush1.msra.mxu0 0.0
      %615 = vmatprep.subr.mxu0 0.0
      %616 = vmatpush1.msra.mxu0 0.0
      %617 = vmatprep.subr.mxu0 0.0
      %618 = vmatpush1.msra.mxu0 0.0
      %619 = vmatprep.subr.mxu0 0.0
      %620 = vmatpush1.msra.mxu0 0.0
      %621 = vmatprep.subr.mxu0 0.0
      %622 = vmatpush1.msra.mxu0 0.0
      %623 = vmatprep.subr.mxu0 0.0
      %624 = vmatpush1.msra.mxu0 0.0
      %625 = vmatprep.subr.mxu0 0.0
      %626 = vmatpush1.msra.mxu0 0.0
      %627 = vmatprep.subr.mxu0 0.0
      %628 = vmatpush1.msra.mxu0 0.0
      %629 = vmatprep.subr.mxu0 0.0
      %630 = vmatpush1.msra.mxu0 0.0
      %631 = vmatprep.subr.mxu0 0.0
      %632 = vmatpush1.msra.mxu0 0.0
      %633 = vmatprep.subr.mxu0 0.0
      %634 = vmatpush1.msra.mxu0 0.0
      %635 = vmatprep.subr.mxu0 0.0
      %636 = vmatpush1.msra.mxu0 0.0
      %637 = vmatprep.subr.mxu0 0.0
      %638 = vmatpush1.msra.mxu0 0.0
      %639 = vmatprep.subr.mxu0 0.0
      %640 = vmatpush1.msra.mxu0 0.0
      %641 = vmatprep.subr.mxu0 0.0
      %642 = vmatpush1.msra.mxu0 0.0
      %643 = vmatprep.subr.mxu0 0.0
      %644 = vmatpush1.msra.mxu0 0.0
      %645 = vmatprep.subr.mxu0 0.0
      %646 = vmatpush1.msra.mxu0 0.0
      %647 = vmatprep.subr.mxu0 0.0
      %648 = vmatpush1.msra.mxu0 0.0
      %649 = vmatprep.subr.mxu0 0.0
      %650 = vmatpush1.msra.mxu0 0.0
      %651 = vmatprep.subr.mxu0 0.0
      %652 = vmatpush1.msra.mxu0 0.0
      %653 = vmatprep.mubr.f32.mxu0 0.0
      %654 = vmatmul.mubr.f32.gmra.mrb[0].mxu0 %v587
      %v655 = vpop.f32.mrb[0].mxu0
      %v656 = vadd.f32 0.0, %v655
      %v657 = vpop.f32.mrb[0].mxu0
      %658 = vdwg.mxu0
      %v659 = vadd.f32 %v586, %v656
      %v660 = vxor.u32 %v659, 2147483648
      %v661 = vmul.f32 %v660, 1.442695
      %v662 = vpow.pop %v661
      %v663 = vadd.f32 %v662, 1.0
      %v664 = vrcp.pop %v663
      %v665 = vmul.f32 1.0, %v664
      %v666 = vtanh.pop %v659
      %v667 = vmul.f32 %v665, %v572
      %669 = vrot.lane.b32.xlu0 %v666, 32
      %v670 = vpop.permute.xlu0 %669
      %v672 = vmul.f32 %v665, %v670
      %674 = vrot.lane.b32.xlu0 %v672, 32
      %v675 = vpop.permute.xlu0 %674
      %v677 = vadd.f32 %v667, %v675
      %v678 = vtanh.pop %v677
      %680 = vrot.lane.b32.xlu0 %v678, 32
      %v681 = vpop.permute.xlu0 %680
      %v683 = vmul.f32 %v665, %v681
      %685 = vrot.lane.b32.xlu0 %v683, 64
      %v686 = vpop.permute.xlu0 %685
      %s688 = scalar_lea.vmem %s248, 6
      %689 = vst.msk [vmem:[%s688] sm:$0x3] %vm373, %v686
      %690 = vst.msk [vmem:[#allocation2] sm:$0x3] %vm373, %v686
      %692 = vrot.lane.b32.xlu0 %v677, 96
      %v693 = vpop.permute.xlu0 %692
      %695 = vst.msk [vmem:[#allocation3] sm:$0x3] %vm373, %v693
      %p696 = scmp.eq.s32.totalorder %s18, 1
      // Predicated region
      $region41: #{encoder_forward.2} parent=35 // pred_check
        %p697 = pneg %p696
      $region42: #{encoder_forward.2} parent=35 // pred_check_branch
        %699 = sbr.rel (%p697) target = $region44
      $region43: #{encoder_forward.2} parent=35 // pred_region
        %700 = vst.msk [vmem:[%s5] sm:$0x3] %vm373, %v686
        %701 = vst.msk [vmem:[%s6] sm:$0x3] %vm373, %v693
      $region44: #{encoder_forward.2} parent=35 // pred_fallthru
        _
      %s702 = smul.u32 4, %s18
      %p703 = scmp.lt.s32.totalorder %s702, 7
      %s704 = scalar_select %p703, %s702, 7
      %s705 = smul.addr %s704, 2
      %s706 = scalar_lea.vmem %s4, %s705
      // Predicated region
      $region45: #{encoder_forward.2} parent=35 // pred_check
        %p707 = pneg %p125
      $region46: #{encoder_forward.2} parent=35 // pred_check_branch
        %709 = sbr.rel (%p707) target = $region48
      $region47: #{encoder_forward.2} parent=35 // pred_region
        %s710 = smul.u32 4, %s18
      $region48: #{encoder_forward.2} parent=35 // pred_fallthru
        _
      // Predicated region
      $region49: #{encoder_forward.2} parent=35 // pred_check
        %p711 = pneg %p146
      $region50: #{encoder_forward.2} parent=35 // pred_check_branch
        %713 = sbr.rel (%p711) target = $region52
      $region51: #{encoder_forward.2} parent=35 // pred_region
        _
      $region52: #{encoder_forward.2} parent=35 // pred_fallthru
        _
      // Predicated region
      $region53: #{encoder_forward.2} parent=35 // pred_check
        %p714 = pneg %p167
      $region54: #{encoder_forward.2} parent=35 // pred_check_branch
        %716 = sbr.rel (%p714) target = $region56
      $region55: #{encoder_forward.2} parent=35 // pred_region
        _
      $region56: #{encoder_forward.2} parent=35 // pred_fallthru
        _
      // Predicated region
      $region57: #{encoder_forward.2} parent=35 // pred_check
        %p717 = pneg %p146
      $region58: #{encoder_forward.2} parent=35 // pred_check_branch
        %719 = sbr.rel (%p717) target = $region60
      $region59: #{encoder_forward.2} parent=35 // pred_region
        _
      $region60: #{encoder_forward.2} parent=35 // pred_fallthru
        _
      // Predicated region
      $region61: #{encoder_forward.2} parent=35 // pred_check
        %p720 = pneg %p167
      $region62: #{encoder_forward.2} parent=35 // pred_check_branch
        %722 = sbr.rel (%p720) target = $region64
      $region63: #{encoder_forward.2} parent=35 // pred_region
        _
      $region64: #{encoder_forward.2} parent=35 // pred_fallthru
        _
    $region36: #{encoder_forward.2} parent=5 // pred_fallthru
      _
    %p723 = scmp.le.s32.totalorder 2, %s13
    // Predicated region
    $region65: #{encoder_forward.2} parent=5 // pred_check
      %p724 = pneg %p723
    $region66: #{encoder_forward.2} parent=5 // pred_check_branch
      %726 = sbr.rel (%p724) target = $region68
    $region67: #{encoder_forward.2} parent=5 // pred_region
      %s727 = ssub.s32 %s13, 2
      // Predicated region
      $region69: #{encoder_forward.2} parent=67 // pred_check
        %p728 = pneg %p131
      $region70: #{encoder_forward.2} parent=67 // pred_check_branch
        %730 = sbr.rel (%p728) target = $region72
      $region71: #{encoder_forward.2} parent=67 // pred_region
        %s731 = smul.u32 4, %s19
        %p732 = scmp.lt.s32.totalorder %s731, 7
        %s733 = scalar_select %p732, %s731, 7
        %s734 = smul.addr %s733, 2
        %s735 = scalar_lea.vmem %s4, %s734
      $region72: #{encoder_forward.2} parent=67 // pred_fallthru
        _
    $region68: #{encoder_forward.2} parent=5 // pred_fallthru
      _
  $region6: #{encoder_forward.2} parent=0 // loop_footer
    %s17 = sadd.s32 1, %s13
  $region7: #{encoder_forward.2} parent=0 // loop_footer_branch
    %12 = sbr.rel target = $region3
  $region8: #{encoder_forward.2} parent=0 // loop_exit
    _

</llo_original>
